<compile_context>
chip_gen: v7x
topology: tpu7x:2x2x1
jax: 0.10.0
libtpu: 0.0.40
codegen_flags: <defaults>
</compile_context>

<pallas_src>
import functools

import jax
import jax.numpy as jnp
from jax.experimental import pallas as pl
from jax.experimental.pallas import tpu as pltpu


DILATION_RATES = (2, 4, 8, 16)
_BN_EPS = 1e-5


# ---------------------------------------------------------------------------
# Pallas kernels
# ---------------------------------------------------------------------------
def _conv3x3_dilated_kernel(x_ref, w_ref, b_ref, o_ref, *, tile_h, W, d, off):
    """One (row-band, Cout-tile) of a dilated 3x3 conv (+folded BN).

    x_ref : (1, Hp, Wp, Cin)          bf16 full padded plane of batch n
                                      (block index depends only on n -> stays
                                      resident across the cout/row grid axes)
    w_ref : (9, Cin, tile_cout)       bf16 tap-major folded weight tile
    b_ref : (1, tile_cout)            f32 folded BN bias tile
    o_ref : (1, tile_h, W, tile_cout) bf16 output tile
    """
    rt = pl.program_id(2)                                 # row-band index
    row0 = pl.multiple_of(rt * tile_h, tile_h)
    cin = x_ref.shape[-1]

    acc = None                                            # f32 vreg accumulator
    for kh in range(3):
        for kw in range(3):
            col0 = off + kw * d                           # static
            patch = x_ref[0,
                          pl.ds(row0 + off + kh * d, tile_h),
                          col0:col0 + W,
                          :]                              # (tile_h, W, Cin) bf16
            part = jnp.dot(
                patch.reshape(tile_h * W, cin),
                w_ref[kh * 3 + kw],
                preferred_element_type=jnp.float32,
            )
            acc = part if acc is None else acc + part
    out = acc + b_ref[...]                                # f32 bias add
    o_ref[...] = out.reshape(o_ref.shape).astype(o_ref.dtype)


def _concat_conv1x1_kernel(x1_ref, x2_ref, x3_ref, x4_ref, w_ref, b_ref, o_ref):
    """Fused channel-concat + 1x1 conv (+folded BN) on one row tile.

    x?_ref: (TR, Cb)       bf16 branch features
    w_ref : (4, Cb, Cout)  bf16 folded weight, one block per branch
    b_ref : (1, Cout)      f32 folded BN bias
    o_ref : (TR, Cout)     f32 output tile (single lane-dense store)
    """
    acc = jnp.dot(x1_ref[...], w_ref[0], preferred_element_type=jnp.float32)
    acc = acc + jnp.dot(x2_ref[...], w_ref[1], preferred_element_type=jnp.float32)
    acc = acc + jnp.dot(x3_ref[...], w_ref[2], preferred_element_type=jnp.float32)
    acc = acc + jnp.dot(x4_ref[...], w_ref[3], preferred_element_type=jnp.float32)
    o_ref[...] = acc + b_ref[...]


# ---------------------------------------------------------------------------
# Glue: BN folding, tiling choices, pallas_call setup
# ---------------------------------------------------------------------------
def _fold_bn(w_last_axis_cout, bn):
    gamma, beta, mean, var = bn
    scale = gamma / jnp.sqrt(var + _BN_EPS)                      # (Cout,)
    w = (w_last_axis_cout * scale).astype(jnp.bfloat16)          # bf16 operand
    b = (beta - mean * scale).astype(jnp.float32)                # f32 bias
    return w, b


def _pick_row_tile(H):
    for t in (8, 16, 4, 2):       # prefer 8-row bands (sublane-aligned)
        if H % t == 0:
            return t
    return H


def _pick_cout_tile(Cout):
    return 256 if Cout % 256 == 0 else Cout


def dilated_conv3x3_bn(xp, H, W, w_hwio, bn, dilation, pad):
    """3x3 conv, stride 1, dilation d, padding d (taken from a pad-`pad` input),
    no conv bias, + folded BN.  xp: (N, H+2*pad, W+2*pad, Cin) bf16, pad >= d.
    Returns (N, H, W, Cout) bf16."""
    N, Hp, Wp, Cin = xp.shape
    Cout = w_hwio.shape[-1]
    d = int(dilation)
    off = pad - d
    assert off >= 0 and Hp == H + 2 * pad and Wp == W + 2 * pad

    w_f, b_f = _fold_bn(w_hwio, bn)              # (3,3,Cin,Cout) bf16, (Cout,) f32
    w_f = w_f.reshape(9, Cin, Cout)
    b_f = b_f.reshape(1, Cout)

    tile_h = _pick_row_tile(H)
    tile_c = _pick_cout_tile(Cout)
    grid = (N, Cout // tile_c, H // tile_h)      # Cout outer, row-band inner

    kernel = functools.partial(_conv3x3_dilated_kernel,
                               tile_h=tile_h, W=W, d=d, off=off)

    return pl.pallas_call(
        kernel,
        out_shape=jax.ShapeDtypeStruct((N, H, W, Cout), jnp.bfloat16),
        grid=grid,
        in_specs=[
            # full padded plane of batch n; block index constant across (c, r)
            pl.BlockSpec((1, Hp, Wp, Cin), lambda n, c, r: (n, 0, 0, 0)),
            # folded weight tile: only changes with the Cout tile (outer axis)
            pl.BlockSpec((9, Cin, tile_c), lambda n, c, r: (0, 0, c)),
            pl.BlockSpec((1, tile_c), lambda n, c, r: (0, c)),
        ],
        out_specs=pl.BlockSpec((1, tile_h, W, tile_c),
                               lambda n, c, r: (n, r, 0, c)),
        compiler_params=pltpu.CompilerParams(
            dimension_semantics=("parallel", "parallel", "parallel")),
    )(xp, w_f, b_f)


def concat_conv1x1_bn(feats, w_io, bn):
    """Fused concat(channel) + 1x1 conv (no bias) + folded BN.
    feats: list of 4 arrays (R, Cb) bf16; w_io: (4*Cb, Cout) f32."""
    R, Cb = feats[0].shape
    Cout = w_io.shape[-1]
    w_f, b_f = _fold_bn(w_io, bn)                # (4*Cb, Cout) bf16
    w_f = w_f.reshape(4, Cb, Cout)
    b_f = b_f.reshape(1, Cout)

    tr = R
    for cand in (256, 128, 64, 32, 16, 8):       # row tile (sublane-aligned)
        if R % cand == 0:
            tr = cand
            break
    grid = (R // tr,)

    return pl.pallas_call(
        _concat_conv1x1_kernel,
        out_shape=jax.ShapeDtypeStruct((R, Cout), jnp.float32),
        grid=grid,
        in_specs=[pl.BlockSpec((tr, Cb), lambda i: (i, 0)) for _ in range(4)]
                + [pl.BlockSpec((4, Cb, Cout), lambda i: (0, 0, 0)),
                   pl.BlockSpec((1, Cout), lambda i: (0, 0))],
        out_specs=pl.BlockSpec((tr, Cout), lambda i: (i, 0)),
        compiler_params=pltpu.CompilerParams(dimension_semantics=("parallel",)),
    )(*feats, w_f, b_f)


# ---------------------------------------------------------------------------
# RFE module: parameters + forward
# ---------------------------------------------------------------------------
def init_rfe_params(key, channel):
    """Deterministic synthetic parameters.

    Channel ratios mirror the PyTorch module (512 -> 1024 -> 256, cat=1024):
    mid = 2*channel, branch = channel//2, cat = 4*branch = 2*channel.
    """
    mid = 2 * channel
    branch = channel // 2
    keys = iter(jax.random.split(key, 64))

    def conv_bn(cin, cout, k):
        kw, kg = jax.random.split(next(keys))
        w = 0.05 * jax.random.normal(kw, (k, k, cin, cout), jnp.float32)
        gamma = 1.0 + 0.1 * jax.random.normal(kg, (cout,), jnp.float32)
        beta = 0.05 * jnp.arange(cout, dtype=jnp.float32) / cout
        mean = 0.02 * jnp.arange(cout, dtype=jnp.float32) / cout
        var = 0.9 * jnp.ones((cout,), jnp.float32)
        return w, (gamma, beta, mean, var)

    branches = []
    for d in DILATION_RATES:
        branches.append((conv_bn(channel, mid, 3), conv_bn(mid, branch, 3), d))
    out_w, out_bn = conv_bn(2 * channel, channel, 1)
    out_w = out_w.reshape(2 * channel, channel)   # 1x1 conv -> (Cin, Cout)
    return branches, (out_w, out_bn)


def rfe_forward(x_nchw, params):
    branches, (out_w, out_bn) = params
    x = jnp.transpose(x_nchw, (0, 2, 3, 1)).astype(jnp.bfloat16)  # NCHW->NHWC
    N, H, W, _ = x.shape

    # One shared zero-padded copy of x (pad = max dilation); each branch's
    # first conv indexes its window at offset (PAD - d) instead of re-padding.
    PAD = max(DILATION_RATES)
    xp = jnp.pad(x, ((0, 0), (PAD, PAD), (PAD, PAD), (0, 0)))

    feats = []
    for (w1, bn1), (w2, bn2), d in branches:
        y = dilated_conv3x3_bn(xp, H, W, w1, bn1, d, pad=PAD)     # bf16
        yp = jnp.pad(y, ((0, 0), (d, d), (d, d), (0, 0)))
        y = dilated_conv3x3_bn(yp, H, W, w2, bn2, d, pad=d)       # bf16
        feats.append(y.reshape(N * H * W, -1))

    out = concat_conv1x1_bn(feats, out_w, out_bn)                 # (R, C) f32
    out = out.reshape(N, H, W, -1)
    return jnp.transpose(out, (0, 3, 1, 2))                       # NHWC->NCHW


# ---------------------------------------------------------------------------
# Pure-JAX reference (mirrors the bf16-operand / f32-accumulate math)
# ---------------------------------------------------------------------------
def _ref_conv_bn(x_bf16, w_hwio, bn, d):
    gamma, beta, mean, var = bn
    scale = gamma / jnp.sqrt(var + _BN_EPS)
    w = (w_hwio * scale).astype(jnp.bfloat16)
    b = (beta - mean * scale).astype(jnp.float32)
    y = jax.lax.conv_general_dilated(
        x_bf16, w, window_strides=(1, 1),
        padding=[(d, d), (d, d)], rhs_dilation=(d, d),
        dimension_numbers=("NHWC", "HWIO", "NHWC"),
        preferred_element_type=jnp.float32)
    return y + b


def rfe_forward_ref(x_nchw, params):
    branches, (out_w, out_bn) = params
    x = jnp.transpose(x_nchw, (0, 2, 3, 1)).astype(jnp.bfloat16)
    feats = []
    for (w1, bn1), (w2, bn2), d in branches:
        y = _ref_conv_bn(x, w1, bn1, d).astype(jnp.bfloat16)
        y = _ref_conv_bn(y, w2, bn2, d).astype(jnp.bfloat16)
        feats.append(y)
    cat = jnp.concatenate(feats, axis=-1)
    # 1x1 conv + BN == channel matmul.
    gamma, beta, mean, var = out_bn
    scale = gamma / jnp.sqrt(var + _BN_EPS)
    w = (out_w * scale).astype(jnp.bfloat16)
    b = (beta - mean * scale).astype(jnp.float32)
    out = jnp.dot(cat, w, preferred_element_type=jnp.float32) + b
    return jnp.transpose(out, (0, 3, 1, 2))


if __name__ == "__main__":
    key = jax.random.PRNGKey(0)
    kx, kp = jax.random.split(key)

    N, channel, H, W = 2, 16, 16, 16              # small, structure-preserving
    x = jax.random.normal(kx, (N, channel, H, W), jnp.float32)
    params = init_rfe_params(kp, channel)

    out = jax.block_until_ready(rfe_forward(x, params))
    assert out.shape == (N, channel, H, W), out.shape

    ref = jax.block_until_ready(rfe_forward_ref(x, params))
    max_err = float(jnp.max(jnp.abs(out - ref)))
    assert jnp.allclose(out, ref, rtol=3e-2, atol=3e-2), max_err

    print("KERNEL_OK")
</pallas_src>

<mosaic_0001>
module attributes {stable_mosaic.version = 11 : i64} {
  func.func @_conv3x3_dilated_kernel(%arg0: i32, %arg1: i32, %arg2: i32, %arg3: memref<1x48x48x16xbf16, #tpu.memory_space<vmem>>, %arg4: memref<9x16x32xbf16, #tpu.memory_space<vmem>>, %arg5: memref<1x32xf32, #tpu.memory_space<vmem>>, %arg6: memref<1x8x16x32xbf16, #tpu.memory_space<vmem>>) attributes {dimension_semantics = [#tpu.dimension_semantics<parallel>, #tpu.dimension_semantics<parallel>, #tpu.dimension_semantics<parallel>], iteration_bounds = array<i64: 2, 1, 2>, scalar_prefetch = 0 : i64, scratch_operands = 0 : i64, tpu.core_type = #tpu.core_type<tc>, window_params = [{transform_indices = @transform_0, window_bounds = array<i64: 1, 48, 48, 16>}, {transform_indices = @transform_1, window_bounds = array<i64: 9, 16, 32>}, {transform_indices = @transform_2, window_bounds = array<i64: 1, 32>}, {transform_indices = @transform_3, window_bounds = array<i64: 1, 8, 16, 32>}]} {
    %c8_i32 = arith.constant 8 : i32
    %0 = arith.muli %arg2, %c8_i32 : i32
    %1 = tpu.assume_multiple %0, 8 : i32
    %c14_i32 = arith.constant 14 : i32
    %2 = arith.addi %1, %c14_i32 : i32
    %c0_i32 = arith.constant 0 : i32
    %3 = arith.addi %2, %c0_i32 : i32
    %c0 = arith.constant 0 : index
    %4 = arith.index_cast %3 : i32 to index
    %c14 = arith.constant 14 : index
    %c0_0 = arith.constant 0 : index
    %5 = vector.load %arg3[%c0, %4, %c14, %c0_0] : memref<1x48x48x16xbf16, #tpu.memory_space<vmem>>, vector<1x8x16x16xbf16>
    %6 = vector.shape_cast %5 : vector<1x8x16x16xbf16> to vector<8x16x16xbf16>
    %7 = vector.shape_cast %6 : vector<8x16x16xbf16> to vector<128x16xbf16>
    %c0_1 = arith.constant 0 : index
    %c0_2 = arith.constant 0 : index
    %c0_3 = arith.constant 0 : index
    %8 = vector.load %arg4[%c0_1, %c0_2, %c0_3] : memref<9x16x32xbf16, #tpu.memory_space<vmem>>, vector<1x16x32xbf16>
    %9 = vector.shape_cast %8 : vector<1x16x32xbf16> to vector<16x32xbf16>
    %cst = arith.constant dense<0.000000e+00> : vector<128x32xf32>
    %10 = tpu.matmul %7, %9, %cst {dimension_numbers = #tpu.dot_dimension_numbers<[1], [0], [0], [1], [0, 0, 1, 1], [], []>} : vector<128x16xbf16>, vector<16x32xbf16>, vector<128x32xf32> -> vector<128x32xf32>
    %c14_i32_4 = arith.constant 14 : i32
    %11 = arith.addi %1, %c14_i32_4 : i32
    %c0_i32_5 = arith.constant 0 : i32
    %12 = arith.addi %11, %c0_i32_5 : i32
    %c0_6 = arith.constant 0 : index
    %13 = arith.index_cast %12 : i32 to index
    %c16 = arith.constant 16 : index
    %c0_7 = arith.constant 0 : index
    %14 = vector.load %arg3[%c0_6, %13, %c16, %c0_7] : memref<1x48x48x16xbf16, #tpu.memory_space<vmem>>, vector<1x8x16x16xbf16>
    %15 = vector.shape_cast %14 : vector<1x8x16x16xbf16> to vector<8x16x16xbf16>
    %16 = vector.shape_cast %15 : vector<8x16x16xbf16> to vector<128x16xbf16>
    %c1 = arith.constant 1 : index
    %c0_8 = arith.constant 0 : index
    %c0_9 = arith.constant 0 : index
    %17 = vector.load %arg4[%c1, %c0_8, %c0_9] : memref<9x16x32xbf16, #tpu.memory_space<vmem>>, vector<1x16x32xbf16>
    %18 = vector.shape_cast %17 : vector<1x16x32xbf16> to vector<16x32xbf16>
    %cst_10 = arith.constant dense<0.000000e+00> : vector<128x32xf32>
    %19 = tpu.matmul %16, %18, %cst_10 {dimension_numbers = #tpu.dot_dimension_numbers<[1], [0], [0], [1], [0, 0, 1, 1], [], []>} : vector<128x16xbf16>, vector<16x32xbf16>, vector<128x32xf32> -> vector<128x32xf32>
    %20 = arith.addf %10, %19 : vector<128x32xf32>
    %c14_i32_11 = arith.constant 14 : i32
    %21 = arith.addi %1, %c14_i32_11 : i32
    %c0_i32_12 = arith.constant 0 : i32
    %22 = arith.addi %21, %c0_i32_12 : i32
    %c0_13 = arith.constant 0 : index
    %23 = arith.index_cast %22 : i32 to index
    %c18 = arith.constant 18 : index
    %c0_14 = arith.constant 0 : index
    %24 = vector.load %arg3[%c0_13, %23, %c18, %c0_14] : memref<1x48x48x16xbf16, #tpu.memory_space<vmem>>, vector<1x8x16x16xbf16>
    %25 = vector.shape_cast %24 : vector<1x8x16x16xbf16> to vector<8x16x16xbf16>
    %26 = vector.shape_cast %25 : vector<8x16x16xbf16> to vector<128x16xbf16>
    %c2 = arith.constant 2 : index
    %c0_15 = arith.constant 0 : index
    %c0_16 = arith.constant 0 : index
    %27 = vector.load %arg4[%c2, %c0_15, %c0_16] : memref<9x16x32xbf16, #tpu.memory_space<vmem>>, vector<1x16x32xbf16>
    %28 = vector.shape_cast %27 : vector<1x16x32xbf16> to vector<16x32xbf16>
    %cst_17 = arith.constant dense<0.000000e+00> : vector<128x32xf32>
    %29 = tpu.matmul %26, %28, %cst_17 {dimension_numbers = #tpu.dot_dimension_numbers<[1], [0], [0], [1], [0, 0, 1, 1], [], []>} : vector<128x16xbf16>, vector<16x32xbf16>, vector<128x32xf32> -> vector<128x32xf32>
    %30 = arith.addf %20, %29 : vector<128x32xf32>
    %c14_i32_18 = arith.constant 14 : i32
    %31 = arith.addi %1, %c14_i32_18 : i32
    %c2_i32 = arith.constant 2 : i32
    %32 = arith.addi %31, %c2_i32 : i32
    %c0_19 = arith.constant 0 : index
    %33 = arith.index_cast %32 : i32 to index
    %c14_20 = arith.constant 14 : index
    %c0_21 = arith.constant 0 : index
    %34 = vector.load %arg3[%c0_19, %33, %c14_20, %c0_21] : memref<1x48x48x16xbf16, #tpu.memory_space<vmem>>, vector<1x8x16x16xbf16>
    %35 = vector.shape_cast %34 : vector<1x8x16x16xbf16> to vector<8x16x16xbf16>
    %36 = vector.shape_cast %35 : vector<8x16x16xbf16> to vector<128x16xbf16>
    %c3 = arith.constant 3 : index
    %c0_22 = arith.constant 0 : index
    %c0_23 = arith.constant 0 : index
    %37 = vector.load %arg4[%c3, %c0_22, %c0_23] : memref<9x16x32xbf16, #tpu.memory_space<vmem>>, vector<1x16x32xbf16>
    %38 = vector.shape_cast %37 : vector<1x16x32xbf16> to vector<16x32xbf16>
    %cst_24 = arith.constant dense<0.000000e+00> : vector<128x32xf32>
    %39 = tpu.matmul %36, %38, %cst_24 {dimension_numbers = #tpu.dot_dimension_numbers<[1], [0], [0], [1], [0, 0, 1, 1], [], []>} : vector<128x16xbf16>, vector<16x32xbf16>, vector<128x32xf32> -> vector<128x32xf32>
    %40 = arith.addf %30, %39 : vector<128x32xf32>
    %c14_i32_25 = arith.constant 14 : i32
    %41 = arith.addi %1, %c14_i32_25 : i32
    %c2_i32_26 = arith.constant 2 : i32
    %42 = arith.addi %41, %c2_i32_26 : i32
    %c0_27 = arith.constant 0 : index
    %43 = arith.index_cast %42 : i32 to index
    %c16_28 = arith.constant 16 : index
    %c0_29 = arith.constant 0 : index
    %44 = vector.load %arg3[%c0_27, %43, %c16_28, %c0_29] : memref<1x48x48x16xbf16, #tpu.memory_space<vmem>>, vector<1x8x16x16xbf16>
    %45 = vector.shape_cast %44 : vector<1x8x16x16xbf16> to vector<8x16x16xbf16>
    %46 = vector.shape_cast %45 : vector<8x16x16xbf16> to vector<128x16xbf16>
    %c4 = arith.constant 4 : index
    %c0_30 = arith.constant 0 : index
    %c0_31 = arith.constant 0 : index
    %47 = vector.load %arg4[%c4, %c0_30, %c0_31] : memref<9x16x32xbf16, #tpu.memory_space<vmem>>, vector<1x16x32xbf16>
    %48 = vector.shape_cast %47 : vector<1x16x32xbf16> to vector<16x32xbf16>
    %cst_32 = arith.constant dense<0.000000e+00> : vector<128x32xf32>
    %49 = tpu.matmul %46, %48, %cst_32 {dimension_numbers = #tpu.dot_dimension_numbers<[1], [0], [0], [1], [0, 0, 1, 1], [], []>} : vector<128x16xbf16>, vector<16x32xbf16>, vector<128x32xf32> -> vector<128x32xf32>
    %50 = arith.addf %40, %49 : vector<128x32xf32>
    %c14_i32_33 = arith.constant 14 : i32
    %51 = arith.addi %1, %c14_i32_33 : i32
    %c2_i32_34 = arith.constant 2 : i32
    %52 = arith.addi %51, %c2_i32_34 : i32
    %c0_35 = arith.constant 0 : index
    %53 = arith.index_cast %52 : i32 to index
    %c18_36 = arith.constant 18 : index
    %c0_37 = arith.constant 0 : index
    %54 = vector.load %arg3[%c0_35, %53, %c18_36, %c0_37] : memref<1x48x48x16xbf16, #tpu.memory_space<vmem>>, vector<1x8x16x16xbf16>
    %55 = vector.shape_cast %54 : vector<1x8x16x16xbf16> to vector<8x16x16xbf16>
    %56 = vector.shape_cast %55 : vector<8x16x16xbf16> to vector<128x16xbf16>
    %c5 = arith.constant 5 : index
    %c0_38 = arith.constant 0 : index
    %c0_39 = arith.constant 0 : index
    %57 = vector.load %arg4[%c5, %c0_38, %c0_39] : memref<9x16x32xbf16, #tpu.memory_space<vmem>>, vector<1x16x32xbf16>
    %58 = vector.shape_cast %57 : vector<1x16x32xbf16> to vector<16x32xbf16>
    %cst_40 = arith.constant dense<0.000000e+00> : vector<128x32xf32>
    %59 = tpu.matmul %56, %58, %cst_40 {dimension_numbers = #tpu.dot_dimension_numbers<[1], [0], [0], [1], [0, 0, 1, 1], [], []>} : vector<128x16xbf16>, vector<16x32xbf16>, vector<128x32xf32> -> vector<128x32xf32>
    %60 = arith.addf %50, %59 : vector<128x32xf32>
    %c14_i32_41 = arith.constant 14 : i32
    %61 = arith.addi %1, %c14_i32_41 : i32
    %c4_i32 = arith.constant 4 : i32
    %62 = arith.addi %61, %c4_i32 : i32
    %c0_42 = arith.constant 0 : index
    %63 = arith.index_cast %62 : i32 to index
    %c14_43 = arith.constant 14 : index
    %c0_44 = arith.constant 0 : index
    %64 = vector.load %arg3[%c0_42, %63, %c14_43, %c0_44] : memref<1x48x48x16xbf16, #tpu.memory_space<vmem>>, vector<1x8x16x16xbf16>
    %65 = vector.shape_cast %64 : vector<1x8x16x16xbf16> to vector<8x16x16xbf16>
    %66 = vector.shape_cast %65 : vector<8x16x16xbf16> to vector<128x16xbf16>
    %c6 = arith.constant 6 : index
    %c0_45 = arith.constant 0 : index
    %c0_46 = arith.constant 0 : index
    %67 = vector.load %arg4[%c6, %c0_45, %c0_46] : memref<9x16x32xbf16, #tpu.memory_space<vmem>>, vector<1x16x32xbf16>
    %68 = vector.shape_cast %67 : vector<1x16x32xbf16> to vector<16x32xbf16>
    %cst_47 = arith.constant dense<0.000000e+00> : vector<128x32xf32>
    %69 = tpu.matmul %66, %68, %cst_47 {dimension_numbers = #tpu.dot_dimension_numbers<[1], [0], [0], [1], [0, 0, 1, 1], [], []>} : vector<128x16xbf16>, vector<16x32xbf16>, vector<128x32xf32> -> vector<128x32xf32>
    %70 = arith.addf %60, %69 : vector<128x32xf32>
    %c14_i32_48 = arith.constant 14 : i32
    %71 = arith.addi %1, %c14_i32_48 : i32
    %c4_i32_49 = arith.constant 4 : i32
    %72 = arith.addi %71, %c4_i32_49 : i32
    %c0_50 = arith.constant 0 : index
    %73 = arith.index_cast %72 : i32 to index
    %c16_51 = arith.constant 16 : index
    %c0_52 = arith.constant 0 : index
    %74 = vector.load %arg3[%c0_50, %73, %c16_51, %c0_52] : memref<1x48x48x16xbf16, #tpu.memory_space<vmem>>, vector<1x8x16x16xbf16>
    %75 = vector.shape_cast %74 : vector<1x8x16x16xbf16> to vector<8x16x16xbf16>
    %76 = vector.shape_cast %75 : vector<8x16x16xbf16> to vector<128x16xbf16>
    %c7 = arith.constant 7 : index
    %c0_53 = arith.constant 0 : index
    %c0_54 = arith.constant 0 : index
    %77 = vector.load %arg4[%c7, %c0_53, %c0_54] : memref<9x16x32xbf16, #tpu.memory_space<vmem>>, vector<1x16x32xbf16>
    %78 = vector.shape_cast %77 : vector<1x16x32xbf16> to vector<16x32xbf16>
    %cst_55 = arith.constant dense<0.000000e+00> : vector<128x32xf32>
    %79 = tpu.matmul %76, %78, %cst_55 {dimension_numbers = #tpu.dot_dimension_numbers<[1], [0], [0], [1], [0, 0, 1, 1], [], []>} : vector<128x16xbf16>, vector<16x32xbf16>, vector<128x32xf32> -> vector<128x32xf32>
    %80 = arith.addf %70, %79 : vector<128x32xf32>
    %c14_i32_56 = arith.constant 14 : i32
    %81 = arith.addi %1, %c14_i32_56 : i32
    %c4_i32_57 = arith.constant 4 : i32
    %82 = arith.addi %81, %c4_i32_57 : i32
    %c0_58 = arith.constant 0 : index
    %83 = arith.index_cast %82 : i32 to index
    %c18_59 = arith.constant 18 : index
    %c0_60 = arith.constant 0 : index
    %84 = vector.load %arg3[%c0_58, %83, %c18_59, %c0_60] : memref<1x48x48x16xbf16, #tpu.memory_space<vmem>>, vector<1x8x16x16xbf16>
    %85 = vector.shape_cast %84 : vector<1x8x16x16xbf16> to vector<8x16x16xbf16>
    %86 = vector.shape_cast %85 : vector<8x16x16xbf16> to vector<128x16xbf16>
    %c8 = arith.constant 8 : index
    %c0_61 = arith.constant 0 : index
    %c0_62 = arith.constant 0 : index
    %87 = vector.load %arg4[%c8, %c0_61, %c0_62] : memref<9x16x32xbf16, #tpu.memory_space<vmem>>, vector<1x16x32xbf16>
    %88 = vector.shape_cast %87 : vector<1x16x32xbf16> to vector<16x32xbf16>
    %cst_63 = arith.constant dense<0.000000e+00> : vector<128x32xf32>
    %89 = tpu.matmul %86, %88, %cst_63 {dimension_numbers = #tpu.dot_dimension_numbers<[1], [0], [0], [1], [0, 0, 1, 1], [], []>} : vector<128x16xbf16>, vector<16x32xbf16>, vector<128x32xf32> -> vector<128x32xf32>
    %90 = arith.addf %80, %89 : vector<128x32xf32>
    %c0_64 = arith.constant 0 : index
    %c0_65 = arith.constant 0 : index
    %91 = vector.load %arg5[%c0_64, %c0_65] : memref<1x32xf32, #tpu.memory_space<vmem>>, vector<1x32xf32>
    %92 = vector.broadcast %91 : vector<1x32xf32> to vector<128x32xf32>
    %93 = arith.addf %90, %92 : vector<128x32xf32>
    %94 = vector.shape_cast %93 : vector<128x32xf32> to vector<1x8x16x32xf32>
    %95 = arith.truncf %94 : vector<1x8x16x32xf32> to vector<1x8x16x32xbf16>
    %c0_66 = arith.constant 0 : index
    %c0_67 = arith.constant 0 : index
    %c0_68 = arith.constant 0 : index
    %c0_69 = arith.constant 0 : index
    %96 = vector.load %arg6[%c0_66, %c0_67, %c0_68, %c0_69] : memref<1x8x16x32xbf16, #tpu.memory_space<vmem>>, vector<1x8x16x32xbf16>
    tpu.vector_store %arg6[%c0_66, %c0_67, %c0_68, %c0_69], %95 {strides = array<i32>} : memref<1x8x16x32xbf16, #tpu.memory_space<vmem>>, vector<1x8x16x32xbf16>,
    return
  }
  func.func @transform_0(%arg0: i32, %arg1: i32, %arg2: i32) -> (i32, i32, i32, i32) {
    %c0_i32 = arith.constant 0 : i32
    %c0_i32_0 = arith.constant 0 : i32
    %c0_i32_1 = arith.constant 0 : i32
    %c0_i32_2 = arith.constant 0 : i32
    return %arg0, %c0_i32, %c0_i32_0, %c0_i32_1 : i32, i32, i32, i32
  }
  func.func @transform_1(%arg0: i32, %arg1: i32, %arg2: i32) -> (i32, i32, i32) {
    %c0_i32 = arith.constant 0 : i32
    %c0_i32_0 = arith.constant 0 : i32
    %c0_i32_1 = arith.constant 0 : i32
    return %c0_i32, %c0_i32_0, %arg1 : i32, i32, i32
  }
  func.func @transform_2(%arg0: i32, %arg1: i32, %arg2: i32) -> (i32, i32) {
    %c0_i32 = arith.constant 0 : i32
    %c0_i32_0 = arith.constant 0 : i32
    return %c0_i32, %arg1 : i32, i32
  }
  func.func @transform_3(%arg0: i32, %arg1: i32, %arg2: i32) -> (i32, i32, i32, i32) {
    %c0_i32 = arith.constant 0 : i32
    %c0_i32_0 = arith.constant 0 : i32
    return %arg0, %arg2, %c0_i32, %arg1 : i32, i32, i32, i32
  }
}

</mosaic_0001>

<llo_original>
// kernel: tpu_custom_call.1
$region0: #{tpu_custom_call.1}
  #allocation0 [shape = 'u32[]', space=smem, size = 0x4, offset = 0x4, fixed_abs, tag = 'smem constant byte address 0x4 - core index']
  #allocation1 [shape = 'u32[144,128]{1,0:T(1,128)}', space=vmem, size = 0x12000, scoped, tag = 'internal scratch']
  %s0 = inlined_call_operand.vmem [shape: bf16[2,48,48,16], index: 0, kind: input, shape index: {}]
  %s1 = inlined_call_operand.vmem [shape: bf16[9,16,32], index: 1, kind: input, shape index: {}]
  %s2 = inlined_call_operand.vmem [shape: f32[1,32], index: 2, kind: input, shape index: {}]
  %s3 = inlined_call_operand.hbm [shape: bf16[2,16,16,32], index: 3, kind: output, shape index: {}]
  %s4 = sld [smem:[#allocation0]]
  $region45: #{tpu_custom_call.1} parent=0
    _
  %s6 = ssub.s32 1, %s4
  %s7 = scalar_select 0, %s6, %s4
  $region1: #{tpu_custom_call.1} parent=0
    #allocation2 [shape = 'u8[65536]{0}', space=vmem, size = 0x10000, scoped, tag = 'output window, operand 0']
    #allocation3 [shape = 's32[2]{0}', space=sflag, size = 0x8, scoped, tag = 'scoped memory for tpu_custom_call.1']
    %8 = vsyncpa [#allocation3], 0
    %s9 = scalar_lea.sflag [#allocation3], 1
    %10 = vsyncpa %s9, 0
    loop: start=0, step=1, limit=6
    $region2: #{tpu_custom_call.1} parent=1 // loop_pre_header
      _
    $region3: #{tpu_custom_call.1} parent=1 // loop_header
      %s12 = sphi 0, %s16
      %p13 = scmp.ge.s32.totalorder %s12, 6
      %s19 = sphi 0, %s38
      %s20 = sphi 0, %s34
      %s21 = sphi 0, %s30
      %s22 = sphi 0, %s19
      %s23 = sphi 0, %s20
      %s24 = sphi 0, %s21
      %s25 = sphi 0, %s22
      %s26 = sphi 0, %s23
      %s27 = sphi 0, %s24
      %s41 = sphi 0, %s43
      %s44 = sphi 0, %s41
      %s45 = sphi 0, %s44
      %s61 = sphi 0, %s45
      %s67 = sphi 0, %s69
      %s70 = sphi 0, %s67
      %s71 = sphi 0, %s70
      %s87 = sphi 0, %s71
      %s93 = sphi 0, %s95
      %s96 = sphi 0, %s93
      %s97 = sphi 0, %s96
      %s113 = sphi 0, %s97
      %s123 = sphi 0, %s125
      %s126 = sphi 0, %s123
      %s127 = sphi 0, %s126
      %s143 = sphi 0, %s127
    $region4: #{tpu_custom_call.1} parent=1 // loop_header_branch
      %15 = sbr.rel (%p13) target = $region8
    $region5: #{tpu_custom_call.1} parent=1 // loop_body
      %s17 = ssub.s32 %s12, 1
      %s18 = ssub.s32 %s12, 2
      %s28 = sadd.s32 1, %s21
      %p29 = scmp.ge.s32.totalorder %s28, 2
      %s30 = scalar_select %p29, 0, %s28
      %s31 = sadd.s32 1, %s20
      %s32 = scalar_select %p29, %s31, %s20
      %p33 = scmp.ge.s32.totalorder %s32, 1
      %s34 = scalar_select %p33, 0, %s32
      %s35 = sadd.s32 1, %s19
      %s36 = scalar_select %p33, %s35, %s19
      %p37 = scmp.ge.s32.totalorder %s36, 2
      %s38 = scalar_select %p37, 0, %s36
      %s39 = ssub.s32 %s19, %s38
      %p40 = scmp.eq.s32.totalorder %s39, 0
      %s42 = sadd.s32 %s41, 1
      %s43 = scalar_select %p40, %s41, %s42
      %p46 = pneg %p40
      %p47 = scmp.eq.s32.totalorder %s12, 3
      %p48 = por %p46, %p47
      %p49 = scmp.ne.s32.totalorder %s41, %s44
      %p50 = scmp.eq.s32.totalorder %s12, 0
      %p51 = por %p49, %p50
      %p52 = scmp.ne.s32.totalorder %s41, %s44
      %p53 = scmp.eq.s32.totalorder %s17, 3
      %p54 = por %p52, %p53
      %p55 = scmp.ne.s32.totalorder %s44, %s45
      %p56 = scmp.eq.s32.totalorder %s17, 0
      %p57 = por %p55, %p56
      %p58 = scmp.ne.s32.totalorder %s44, %s45
      %p59 = scmp.eq.s32.totalorder %s18, 3
      %p60 = por %p58, %p59
      %p62 = scmp.ne.s32.totalorder %s45, %s61
      %p63 = scmp.eq.s32.totalorder %s18, 0
      %p64 = por %p62, %p63
      %s65 = ssub.s32 %s20, %s34
      %p66 = scmp.eq.s32.totalorder %s65, 0
      %s68 = sadd.s32 %s67, 1
      %s69 = scalar_select %p66, %s67, %s68
      %p72 = pneg %p66
      %p73 = scmp.eq.s32.totalorder %s12, 3
      %p74 = por %p72, %p73
      %p75 = scmp.ne.s32.totalorder %s67, %s70
      %p76 = scmp.eq.s32.totalorder %s12, 0
      %p77 = por %p75, %p76
      %p78 = scmp.ne.s32.totalorder %s67, %s70
      %p79 = scmp.eq.s32.totalorder %s17, 3
      %p80 = por %p78, %p79
      %p81 = scmp.ne.s32.totalorder %s70, %s71
      %p82 = scmp.eq.s32.totalorder %s17, 0
      %p83 = por %p81, %p82
      %p84 = scmp.ne.s32.totalorder %s70, %s71
      %p85 = scmp.eq.s32.totalorder %s18, 3
      %p86 = por %p84, %p85
      %p88 = scmp.ne.s32.totalorder %s71, %s87
      %p89 = scmp.eq.s32.totalorder %s18, 0
      %p90 = por %p88, %p89
      %s91 = ssub.s32 %s20, %s34
      %p92 = scmp.eq.s32.totalorder %s91, 0
      %s94 = sadd.s32 %s93, 1
      %s95 = scalar_select %p92, %s93, %s94
      %p98 = pneg %p92
      %p99 = scmp.eq.s32.totalorder %s12, 3
      %p100 = por %p98, %p99
      %p101 = scmp.ne.s32.totalorder %s93, %s96
      %p102 = scmp.eq.s32.totalorder %s12, 0
      %p103 = por %p101, %p102
      %p104 = scmp.ne.s32.totalorder %s93, %s96
      %p105 = scmp.eq.s32.totalorder %s17, 3
      %p106 = por %p104, %p105
      %p107 = scmp.ne.s32.totalorder %s96, %s97
      %p108 = scmp.eq.s32.totalorder %s17, 0
      %p109 = por %p107, %p108
      %p110 = scmp.ne.s32.totalorder %s96, %s97
      %p111 = scmp.eq.s32.totalorder %s18, 3
      %p112 = por %p110, %p111
      %p114 = scmp.ne.s32.totalorder %s97, %s113
      %p115 = scmp.eq.s32.totalorder %s18, 0
      %p116 = por %p114, %p115
      %s117 = ssub.s32 %s19, %s38
      %s118 = ssub.s32 %s21, %s30
      %s119 = sor.u32 %s117, %s118
      %s120 = ssub.s32 %s20, %s34
      %s121 = sor.u32 %s119, %s120
      %p122 = scmp.eq.s32.totalorder %s121, 0
      %s124 = sadd.s32 %s123, 1
      %s125 = scalar_select %p122, %s123, %s124
      %p128 = pneg %p122
      %p129 = scmp.eq.s32.totalorder %s12, 3
      %p130 = por %p128, %p129
      %p131 = scmp.ne.s32.totalorder %s123, %s126
      %p132 = scmp.eq.s32.totalorder %s12, 0
      %p133 = por %p131, %p132
      %p134 = scmp.ne.s32.totalorder %s123, %s126
      %p135 = scmp.eq.s32.totalorder %s17, 3
      %p136 = por %p134, %p135
      %p137 = scmp.ne.s32.totalorder %s126, %s127
      %p138 = scmp.eq.s32.totalorder %s17, 0
      %p139 = por %p137, %p138
      %p140 = scmp.ne.s32.totalorder %s126, %s127
      %p141 = scmp.eq.s32.totalorder %s18, 3
      %p142 = por %p140, %p141
      %p144 = scmp.ne.s32.totalorder %s127, %s143
      %p145 = scmp.eq.s32.totalorder %s18, 0
      %p146 = por %p144, %p145
      %p147 = scmp.le.s32.totalorder 1, %s12
      %p148 = scmp.lt.s32.totalorder %s12, 5
      %p149 = pnand %p147, %p148
      %p150 = pneg %p149
      // Predicated region
      $region9: #{tpu_custom_call.1} parent=5 // pred_check
        _
      $region10: #{tpu_custom_call.1} parent=5 // pred_check_branch
        %152 = sbr.rel (%p149) target = $region12
      $region11: #{tpu_custom_call.1} parent=5 // pred_region
        %s153 = ssub.s32 %s12, 1
        // Predicated region
        $region13: #{tpu_custom_call.1} parent=11 // pred_check
          %p154 = pneg %p83
        $region14: #{tpu_custom_call.1} parent=11 // pred_check_branch
          %156 = sbr.rel (%p154) target = $region16
        $region15: #{tpu_custom_call.1} parent=11 // pred_region
          %p157 = scmp.lt.s32.totalorder %s23, 0
          %s158 = scalar_select %p157, %s23, 0
          %s159 = smul.addr %s158, 4
          %s160 = scalar_lea.vmem %s1, %s159
        $region16: #{tpu_custom_call.1} parent=11 // pred_fallthru
          _
        // Predicated region
        $region17: #{tpu_custom_call.1} parent=11 // pred_check
          %p161 = pneg %p109
        $region18: #{tpu_custom_call.1} parent=11 // pred_check_branch
          %163 = sbr.rel (%p161) target = $region20
        $region19: #{tpu_custom_call.1} parent=11 // pred_region
          %p164 = scmp.lt.s32.totalorder %s23, 0
          %s165 = scalar_select %p164, %s23, 0
          %s166 = scalar_lea.vmem %s2, %s165
        $region20: #{tpu_custom_call.1} parent=11 // pred_fallthru
          _
      $region12: #{tpu_custom_call.1} parent=5 // pred_fallthru
        _
      %p167 = scmp.lt.s32.totalorder %s12, 4
      // Predicated region
      $region21: #{tpu_custom_call.1} parent=5 // pred_check
        %p168 = pneg %p167
      $region22: #{tpu_custom_call.1} parent=5 // pred_check_branch
        %170 = sbr.rel (%p168) target = $region24
      $region23: #{tpu_custom_call.1} parent=5 // pred_region
        // Predicated region
        $region25: #{tpu_custom_call.1} parent=23 // pred_check
          %p171 = pneg %p51
        $region26: #{tpu_custom_call.1} parent=23 // pred_check_branch
          %173 = sbr.rel (%p171) target = $region28
        $region27: #{tpu_custom_call.1} parent=23 // pred_region
          %p174 = scmp.lt.s32.totalorder %s19, 1
          %s175 = scalar_select %p174, %s19, 1
          %s176 = smul.addr %s175, 288
          %s177 = smul.addr %s176, 4
          %s178 = scalar_lea.vmem %s0, %s177
        $region28: #{tpu_custom_call.1} parent=23 // pred_fallthru
          _
      $region24: #{tpu_custom_call.1} parent=5 // pred_fallthru
        _
      %p179 = scmp.le.s32.totalorder 1, %s12
      %p180 = scmp.lt.s32.totalorder %s12, 5
      %p181 = pnand %p179, %p180
      %p182 = pneg %p181
      // Predicated region
      $region29: #{tpu_custom_call.1} parent=5 // pred_check
        _
      $region30: #{tpu_custom_call.1} parent=5 // pred_check_branch
        %184 = sbr.rel (%p181) target = $region32
      $region31: #{tpu_custom_call.1} parent=5 // pred_region
        %s185 = ssub.s32 %s12, 1
        %p186 = scmp.lt.s32.totalorder %s22, 1
        %s187 = scalar_select %p186, %s22, 1
        %s188 = smul.addr %s187, 288
        %s189 = smul.addr %s188, 4
        %s190 = scalar_lea.vmem %s0, %s189
        %p191 = pneg %p57
        %p192 = pneg %p54
        %p193 = scmp.lt.s32.totalorder %s23, 0
        %s194 = scalar_select %p193, %s23, 0
        %s195 = smul.addr %s194, 4
        %s196 = scalar_lea.vmem %s1, %s195
        %p197 = pneg %p83
        %p198 = pneg %p80
        %p199 = scmp.lt.s32.totalorder %s23, 0
        %s200 = scalar_select %p199, %s23, 0
        %s201 = scalar_lea.vmem %s2, %s200
        %p202 = pneg %p109
        %p203 = pneg %p106
        %p204 = pneg %p139
        %p205 = pneg %p136
        %s206 = sand.u32 %s126, 1
        %s207 = scalar_lea.sflag [#allocation3], %s206
        %s208 = sand.u32 %s126, 1
        %s209 = smul.addr %s208, 64
        %s210 = scalar_lea.vmem [#allocation2], %s209
        %p211 = scmp.lt.s32.totalorder %s22, 1
        %s212 = scalar_select %p211, %s22, 1
        %s213 = smul.addr %s212, 288
        %s214 = smul.addr %s213, 4
        %s215 = scalar_lea.vmem %s0, %s214
        %p216 = scmp.lt.s32.totalorder %s23, 0
        %s217 = scalar_select %p216, %s23, 0
        %s218 = smul.addr %s217, 4
        %s219 = scalar_lea.vmem %s1, %s218
        %p220 = scmp.lt.s32.totalorder %s23, 0
        %s221 = scalar_select %p220, %s23, 0
        %s222 = scalar_lea.vmem %s2, %s221
        %s223 = smul.u32 8, %s24
        %s225 = smul.u32 %s24, 8
        %s226 = sadd.s32 %s225, 14
        %s227 = smul.u32 %s226, 6
        %s228 = smul.addr %s227, 4
        %s229 = scalar_lea.vmem %s215, %s228
        %v230 = vld [vmem:[%s229 + $0x4] sm:$0x8]
        %v231 = vld [vmem:[%s229 + $0x8] sm:$0xf]
        %v232 = vld [vmem:[%s229 + $0xc] sm:$0x7]
        %v233 = vld [vmem:[%s229 + $0x1c] sm:$0x8]
        %v234 = vld [vmem:[%s229 + $0x20] sm:$0xf]
        %v235 = vld [vmem:[%s229 + $0x24] sm:$0x7]
        %v236 = vld [vmem:[%s229 + $0x34] sm:$0x8]
        %v237 = vld [vmem:[%s229 + $0x38] sm:$0xf]
        %v238 = vld [vmem:[%s229 + $0x3c] sm:$0x7]
        %v239 = vld [vmem:[%s229 + $0x4c] sm:$0x8]
        %v240 = vld [vmem:[%s229 + $0x50] sm:$0xf]
        %v241 = vld [vmem:[%s229 + $0x54] sm:$0x7]
        %v242 = vld [vmem:[%s229 + $0x64] sm:$0x8]
        %v243 = vld [vmem:[%s229 + $0x68] sm:$0xf]
        %v244 = vld [vmem:[%s229 + $0x6c] sm:$0x7]
        %v245 = vld [vmem:[%s229 + $0x7c] sm:$0x8]
        %v246 = vld [vmem:[%s229 + $0x80] sm:$0xf]
        %v247 = vld [vmem:[%s229 + $0x84] sm:$0x7]
        %v248 = vld [vmem:[%s229 + $0x94] sm:$0x8]
        %v249 = vld [vmem:[%s229 + $0x98] sm:$0xf]
        %v250 = vld [vmem:[%s229 + $0x9c] sm:$0x7]
        %v251 = vld [vmem:[%s229 + $0xac] sm:$0x8]
        %v252 = vld [vmem:[%s229 + $0xb0] sm:$0xf]
        %v253 = vld [vmem:[%s229 + $0xb4] sm:$0x7]
        %vm278 = vcmask 1040384
        %vm279 = vcmask 1044484
        %vm280 = vmor %vm278, %vm279
        %v281 = vrot.slane %v230, 7
        %v282 = vrot.slane %v281, 4
        %v283 = vrot.slane %v231, 7
        %v284 = vsel %vm280, %v282, %v283
        %v285 = vrot.slane %v283, 4
        %v286 = vrot.slane %v232, 7
        %v287 = vsel %vm280, %v285, %v286
        %v288 = vrot.slane %v233, 7
        %v289 = vrot.slane %v288, 4
        %v290 = vrot.slane %v234, 7
        %v291 = vsel %vm280, %v289, %v290
        %v292 = vrot.slane %v290, 4
        %v293 = vrot.slane %v235, 7
        %v294 = vsel %vm280, %v292, %v293
        %v295 = vrot.slane %v236, 7
        %v296 = vrot.slane %v295, 4
        %v297 = vrot.slane %v237, 7
        %v298 = vsel %vm280, %v296, %v297
        %v299 = vrot.slane %v297, 4
        %v300 = vrot.slane %v238, 7
        %v301 = vsel %vm280, %v299, %v300
        %v302 = vrot.slane %v239, 7
        %v303 = vrot.slane %v302, 4
        %v304 = vrot.slane %v240, 7
        %v305 = vsel %vm280, %v303, %v304
        %v306 = vrot.slane %v304, 4
        %v307 = vrot.slane %v241, 7
        %v308 = vsel %vm280, %v306, %v307
        %v309 = vrot.slane %v242, 7
        %v310 = vrot.slane %v309, 4
        %v311 = vrot.slane %v243, 7
        %v312 = vsel %vm280, %v310, %v311
        %v313 = vrot.slane %v311, 4
        %v314 = vrot.slane %v244, 7
        %v315 = vsel %vm280, %v313, %v314
        %v316 = vrot.slane %v245, 7
        %v317 = vrot.slane %v316, 4
        %v318 = vrot.slane %v246, 7
        %v319 = vsel %vm280, %v317, %v318
        %v320 = vrot.slane %v318, 4
        %v321 = vrot.slane %v247, 7
        %v322 = vsel %vm280, %v320, %v321
        %v323 = vrot.slane %v248, 7
        %v324 = vrot.slane %v323, 4
        %v325 = vrot.slane %v249, 7
        %v326 = vsel %vm280, %v324, %v325
        %v327 = vrot.slane %v325, 4
        %v328 = vrot.slane %v250, 7
        %v329 = vsel %vm280, %v327, %v328
        %v330 = vrot.slane %v251, 7
        %v331 = vrot.slane %v330, 4
        %v332 = vrot.slane %v252, 7
        %v333 = vsel %vm280, %v331, %v332
        %v334 = vrot.slane %v332, 4
        %v335 = vrot.slane %v253, 7
        %v336 = vsel %vm280, %v334, %v335
        %v337 = vld [vmem:[%s219] sm:$0xf]
        %v338 = vld [vmem:[%s219 + $0x4] sm:$0xf]
        %v339 = vld [vmem:[%s229 + $0xc] sm:$0xf]
        %v340 = vld [vmem:[%s229 + $0x24] sm:$0xf]
        %v341 = vld [vmem:[%s229 + $0x3c] sm:$0xf]
        %v342 = vld [vmem:[%s229 + $0x54] sm:$0xf]
        %v343 = vld [vmem:[%s229 + $0x6c] sm:$0xf]
        %v344 = vld [vmem:[%s229 + $0x84] sm:$0xf]
        %v345 = vld [vmem:[%s229 + $0x9c] sm:$0xf]
        %v346 = vld [vmem:[%s229 + $0xb4] sm:$0xf]
        %s347 = scalar_lea.vmem %s219, 8
        %v348 = vld [vmem:[%s347] sm:$0xf]
        %v349 = vld [vmem:[%s347 + $0x4] sm:$0xf]
        %v358 = vunpack.c.l.b16 %v231
        %v359 = vunpack.c.l.b16 %v339
        %v360 = vunpack.c.l.b16 %v234
        %v361 = vunpack.c.l.b16 %v340
        %v362 = vunpack.c.l.b16 %v237
        %v363 = vunpack.c.l.b16 %v341
        %v364 = vunpack.c.l.b16 %v240
        %v365 = vunpack.c.l.b16 %v342
        %v366 = vunpack.c.l.b16 %v243
        %v367 = vunpack.c.l.b16 %v343
        %v368 = vunpack.c.l.b16 %v246
        %v369 = vunpack.c.l.b16 %v344
        %v370 = vunpack.c.l.b16 %v249
        %v371 = vunpack.c.l.b16 %v345
        %v372 = vunpack.c.l.b16 %v252
        %v373 = vunpack.c.l.b16 %v346
        %v374 = vpack.c.b16 %v359, %v358
        %v375 = vpack.c.b16 %v361, %v360
        %v376 = vpack.c.b16 %v363, %v362
        %v377 = vpack.c.b16 %v365, %v364
        %v378 = vpack.c.b16 %v367, %v366
        %v379 = vpack.c.b16 %v369, %v368
        %v380 = vpack.c.b16 %v371, %v370
        %v381 = vpack.c.b16 %v373, %v372
        %v384 = vunpack.c.l.b16 %v348
        %v385 = vunpack.c.l.b16 %v349
        %v386 = vpack.c.b16 %v385, %v384
        %vm388 = vcmask 130048
        %v390 = vsel %vm388, %v374, 0
        %v393 = vsel %vm388, %v375, 0
        %v396 = vsel %vm388, %v376, 0
        %v399 = vsel %vm388, %v377, 0
        %v402 = vsel %vm388, %v378, 0
        %v405 = vsel %vm388, %v379, 0
        %v408 = vsel %vm388, %v380, 0
        %v411 = vsel %vm388, %v381, 0
        %413 = vmatprep.subr.bf16.mxu0 0
        %414 = vmatpush1.bf16.msra.mxu0 %v386
        %415 = vmatprep.subr.bf16.mxu0 0
        %416 = vmatpush1.bf16.msra.mxu0 0
        %417 = vmatprep.subr.bf16.mxu0 0
        %418 = vmatpush1.bf16.msra.mxu0 0
        %419 = vmatprep.subr.bf16.mxu0 0
        %420 = vmatpush1.bf16.msra.mxu0 0
        %421 = vmatprep.subr.bf16.mxu0 0
        %422 = vmatpush1.bf16.msra.mxu0 0
        %423 = vmatprep.subr.bf16.mxu0 0
        %424 = vmatpush1.bf16.msra.mxu0 0
        %425 = vmatprep.subr.bf16.mxu0 0
        %426 = vmatpush1.bf16.msra.mxu0 0
        %427 = vmatprep.subr.bf16.mxu0 0
        %428 = vmatpush1.bf16.msra.mxu0 0
        %429 = vmatprep.subr.bf16.mxu0 0
        %430 = vmatpush1.bf16.msra.mxu0 0
        %431 = vmatprep.subr.bf16.mxu0 0
        %432 = vmatpush1.bf16.msra.mxu0 0
        %433 = vmatprep.subr.bf16.mxu0 0
        %434 = vmatpush1.bf16.msra.mxu0 0
        %435 = vmatprep.subr.bf16.mxu0 0
        %436 = vmatpush1.bf16.msra.mxu0 0
        %437 = vmatprep.subr.bf16.mxu0 0
        %438 = vmatpush1.bf16.msra.mxu0 0
        %439 = vmatprep.subr.bf16.mxu0 0
        %440 = vmatpush1.bf16.msra.mxu0 0
        %441 = vmatprep.subr.bf16.mxu0 0
        %442 = vmatpush1.bf16.msra.mxu0 0
        %443 = vmatprep.subr.bf16.mxu0 0
        %444 = vmatpush1.bf16.msra.mxu0 0
        %445 = vmatprep.mubr.bf16.mxu0 0
        %446 = vmatmul.mubr.bf16.gmra.mrb[0].mxu0 %v390
        %v447 = vpop.f32.mrb[0].mxu0
        %v448 = vadd.f32 0.0, %v447
        %v449 = vpop.f32.mrb[0].mxu0
        %v450 = vpop.f32.mrb[0].mxu0
        %v451 = vadd.f32 0.0, %v450
        %v452 = vpop.f32.mrb[0].mxu0
        %453 = vmatprep.mubr.bf16.mxu0 0
        %454 = vmatmul.mubr.bf16.gmra.mrb[0].mxu0 %v393
        %v455 = vpop.f32.mrb[0].mxu0
        %v456 = vadd.f32 0.0, %v455
        %v457 = vpop.f32.mrb[0].mxu0
        %v458 = vpop.f32.mrb[0].mxu0
        %v459 = vadd.f32 0.0, %v458
        %v460 = vpop.f32.mrb[0].mxu0
        %461 = vmatprep.mubr.bf16.mxu0 0
        %462 = vmatmul.mubr.bf16.gmra.mrb[0].mxu0 %v396
        %v463 = vpop.f32.mrb[0].mxu0
        %v464 = vadd.f32 0.0, %v463
        %v465 = vpop.f32.mrb[0].mxu0
        %v466 = vpop.f32.mrb[0].mxu0
        %v467 = vadd.f32 0.0, %v466
        %v468 = vpop.f32.mrb[0].mxu0
        %469 = vmatprep.mubr.bf16.mxu0 0
        %470 = vmatmul.mubr.bf16.gmra.mrb[0].mxu0 %v399
        %v471 = vpop.f32.mrb[0].mxu0
        %v472 = vadd.f32 0.0, %v471
        %v473 = vpop.f32.mrb[0].mxu0
        %v474 = vpop.f32.mrb[0].mxu0
        %v475 = vadd.f32 0.0, %v474
        %v476 = vpop.f32.mrb[0].mxu0
        %477 = vmatprep.mubr.bf16.mxu0 0
        %478 = vmatmul.mubr.bf16.gmra.mrb[0].mxu0 %v402
        %v479 = vpop.f32.mrb[0].mxu0
        %v480 = vadd.f32 0.0, %v479
        %v481 = vpop.f32.mrb[0].mxu0
        %v482 = vpop.f32.mrb[0].mxu0
        %v483 = vadd.f32 0.0, %v482
        %v484 = vpop.f32.mrb[0].mxu0
        %485 = vmatprep.mubr.bf16.mxu0 0
        %486 = vmatmul.mubr.bf16.gmra.mrb[0].mxu0 %v405
        %v487 = vpop.f32.mrb[0].mxu0
        %v488 = vadd.f32 0.0, %v487
        %v489 = vpop.f32.mrb[0].mxu0
        %v490 = vpop.f32.mrb[0].mxu0
        %v491 = vadd.f32 0.0, %v490
        %v492 = vpop.f32.mrb[0].mxu0
        %493 = vmatprep.mubr.bf16.mxu0 0
        %494 = vmatmul.mubr.bf16.gmra.mrb[0].mxu0 %v408
        %v495 = vpop.f32.mrb[0].mxu0
        %v496 = vadd.f32 0.0, %v495
        %v497 = vpop.f32.mrb[0].mxu0
        %v498 = vpop.f32.mrb[0].mxu0
        %v499 = vadd.f32 0.0, %v498
        %v500 = vpop.f32.mrb[0].mxu0
        %501 = vmatprep.mubr.bf16.mxu0 0
        %502 = vmatmul.mubr.bf16.gmra.mrb[0].mxu0 %v411
        %v503 = vpop.f32.mrb[0].mxu0
        %v504 = vadd.f32 0.0, %v503
        %v505 = vpop.f32.mrb[0].mxu0
        %v506 = vpop.f32.mrb[0].mxu0
        %v507 = vadd.f32 0.0, %v506
        %v508 = vpop.f32.mrb[0].mxu0
        %509 = vdwg.mxu0
        %v510 = vunpack.c.l.b16 %v284
        %v511 = vunpack.c.l.b16 %v287
        %v512 = vunpack.c.l.b16 %v291
        %v513 = vunpack.c.l.b16 %v294
        %v514 = vunpack.c.l.b16 %v298
        %v515 = vunpack.c.l.b16 %v301
        %v516 = vunpack.c.l.b16 %v305
        %v517 = vunpack.c.l.b16 %v308
        %v518 = vunpack.c.l.b16 %v312
        %v519 = vunpack.c.l.b16 %v315
        %v520 = vunpack.c.l.b16 %v319
        %v521 = vunpack.c.l.b16 %v322
        %v522 = vunpack.c.l.b16 %v326
        %v523 = vunpack.c.l.b16 %v329
        %v524 = vunpack.c.l.b16 %v333
        %v525 = vunpack.c.l.b16 %v336
        %v526 = vpack.c.b16 %v511, %v510
        %v527 = vpack.c.b16 %v513, %v512
        %v528 = vpack.c.b16 %v515, %v514
        %v529 = vpack.c.b16 %v517, %v516
        %v530 = vpack.c.b16 %v519, %v518
        %v531 = vpack.c.b16 %v521, %v520
        %v532 = vpack.c.b16 %v523, %v522
        %v533 = vpack.c.b16 %v525, %v524
        %v536 = vunpack.c.l.b16 %v337
        %v537 = vunpack.c.l.b16 %v338
        %v538 = vpack.c.b16 %v537, %v536
        %v541 = vsel %vm388, %v526, 0
        %v544 = vsel %vm388, %v527, 0
        %v547 = vsel %vm388, %v528, 0
        %v550 = vsel %vm388, %v529, 0
        %v553 = vsel %vm388, %v530, 0
        %v556 = vsel %vm388, %v531, 0
        %v559 = vsel %vm388, %v532, 0
        %v562 = vsel %vm388, %v533, 0
        %564 = vmatprep.subr.bf16.mxu0 0
        %565 = vmatpush1.bf16.msra.mxu0 %v538
        %566 = vmatprep.subr.bf16.mxu0 0
        %567 = vmatpush1.bf16.msra.mxu0 0
        %568 = vmatprep.subr.bf16.mxu0 0
        %569 = vmatpush1.bf16.msra.mxu0 0
        %570 = vmatprep.subr.bf16.mxu0 0
        %571 = vmatpush1.bf16.msra.mxu0 0
        %572 = vmatprep.subr.bf16.mxu0 0
        %573 = vmatpush1.bf16.msra.mxu0 0
        %574 = vmatprep.subr.bf16.mxu0 0
        %575 = vmatpush1.bf16.msra.mxu0 0
        %576 = vmatprep.subr.bf16.mxu0 0
        %577 = vmatpush1.bf16.msra.mxu0 0
        %578 = vmatprep.subr.bf16.mxu0 0
        %579 = vmatpush1.bf16.msra.mxu0 0
        %580 = vmatprep.subr.bf16.mxu0 0
        %581 = vmatpush1.bf16.msra.mxu0 0
        %582 = vmatprep.subr.bf16.mxu0 0
        %583 = vmatpush1.bf16.msra.mxu0 0
        %584 = vmatprep.subr.bf16.mxu0 0
        %585 = vmatpush1.bf16.msra.mxu0 0
        %586 = vmatprep.subr.bf16.mxu0 0
        %587 = vmatpush1.bf16.msra.mxu0 0
        %588 = vmatprep.subr.bf16.mxu0 0
        %589 = vmatpush1.bf16.msra.mxu0 0
        %590 = vmatprep.subr.bf16.mxu0 0
        %591 = vmatpush1.bf16.msra.mxu0 0
        %592 = vmatprep.subr.bf16.mxu0 0
        %593 = vmatpush1.bf16.msra.mxu0 0
        %594 = vmatprep.subr.bf16.mxu0 0
        %595 = vmatpush1.bf16.msra.mxu0 0
        %596 = vmatprep.mubr.bf16.mxu0 0
        %597 = vmatmul.mubr.bf16.gmra.mrb[0].mxu0 %v541
        %v598 = vpop.f32.mrb[0].mxu0
        %v599 = vadd.f32 %v448, %v598
        %v600 = vpop.f32.mrb[0].mxu0
        %v601 = vpop.f32.mrb[0].mxu0
        %v602 = vadd.f32 %v451, %v601
        %v603 = vpop.f32.mrb[0].mxu0
        %604 = vmatprep.mubr.bf16.mxu0 0
        %605 = vmatmul.mubr.bf16.gmra.mrb[0].mxu0 %v544
        %v606 = vpop.f32.mrb[0].mxu0
        %v607 = vadd.f32 %v456, %v606
        %v608 = vpop.f32.mrb[0].mxu0
        %v609 = vpop.f32.mrb[0].mxu0
        %v610 = vadd.f32 %v459, %v609
        %v611 = vpop.f32.mrb[0].mxu0
        %612 = vmatprep.mubr.bf16.mxu0 0
        %613 = vmatmul.mubr.bf16.gmra.mrb[0].mxu0 %v547
        %v614 = vpop.f32.mrb[0].mxu0
        %v615 = vadd.f32 %v464, %v614
        %v616 = vpop.f32.mrb[0].mxu0
        %v617 = vpop.f32.mrb[0].mxu0
        %v618 = vadd.f32 %v467, %v617
        %v619 = vpop.f32.mrb[0].mxu0
        %620 = vmatprep.mubr.bf16.mxu0 0
        %621 = vmatmul.mubr.bf16.gmra.mrb[0].mxu0 %v550
        %v622 = vpop.f32.mrb[0].mxu0
        %v623 = vadd.f32 %v472, %v622
        %v624 = vpop.f32.mrb[0].mxu0
        %v625 = vpop.f32.mrb[0].mxu0
        %v626 = vadd.f32 %v475, %v625
        %v627 = vpop.f32.mrb[0].mxu0
        %628 = vmatprep.mubr.bf16.mxu0 0
        %629 = vmatmul.mubr.bf16.gmra.mrb[0].mxu0 %v553
        %v630 = vpop.f32.mrb[0].mxu0
        %v631 = vadd.f32 %v480, %v630
        %v632 = vpop.f32.mrb[0].mxu0
        %v633 = vpop.f32.mrb[0].mxu0
        %v634 = vadd.f32 %v483, %v633
        %v635 = vpop.f32.mrb[0].mxu0
        %636 = vmatprep.mubr.bf16.mxu0 0
        %637 = vmatmul.mubr.bf16.gmra.mrb[0].mxu0 %v556
        %v638 = vpop.f32.mrb[0].mxu0
        %v639 = vadd.f32 %v488, %v638
        %v640 = vpop.f32.mrb[0].mxu0
        %v641 = vpop.f32.mrb[0].mxu0
        %v642 = vadd.f32 %v491, %v641
        %v643 = vpop.f32.mrb[0].mxu0
        %644 = vmatprep.mubr.bf16.mxu0 0
        %645 = vmatmul.mubr.bf16.gmra.mrb[0].mxu0 %v559
        %v646 = vpop.f32.mrb[0].mxu0
        %v647 = vadd.f32 %v496, %v646
        %v648 = vpop.f32.mrb[0].mxu0
        %v649 = vpop.f32.mrb[0].mxu0
        %v650 = vadd.f32 %v499, %v649
        %v651 = vpop.f32.mrb[0].mxu0
        %652 = vmatprep.mubr.bf16.mxu0 0
        %653 = vmatmul.mubr.bf16.gmra.mrb[0].mxu0 %v562
        %v654 = vpop.f32.mrb[0].mxu0
        %v655 = vadd.f32 %v504, %v654
        %v656 = vpop.f32.mrb[0].mxu0
        %v657 = vpop.f32.mrb[0].mxu0
        %v658 = vadd.f32 %v507, %v657
        %v659 = vpop.f32.mrb[0].mxu0
        %660 = vdwg.mxu0
        %v661 = vld [vmem:[%s229 + $0x8] sm:$0xe]
        %v662 = vld [vmem:[%s229 + $0xc] sm:$0xf]
        %v663 = vld [vmem:[%s229 + $0x10] sm:$0x1]
        %v664 = vld [vmem:[%s229 + $0x20] sm:$0xe]
        %v665 = vld [vmem:[%s229 + $0x24] sm:$0xf]
        %v666 = vld [vmem:[%s229 + $0x28] sm:$0x1]
        %v667 = vld [vmem:[%s229 + $0x38] sm:$0xe]
        %v668 = vld [vmem:[%s229 + $0x3c] sm:$0xf]
        %v669 = vld [vmem:[%s229 + $0x40] sm:$0x1]
        %v670 = vld [vmem:[%s229 + $0x50] sm:$0xe]
        %v671 = vld [vmem:[%s229 + $0x54] sm:$0xf]
        %v672 = vld [vmem:[%s229 + $0x58] sm:$0x1]
        %v673 = vld [vmem:[%s229 + $0x68] sm:$0xe]
        %v674 = vld [vmem:[%s229 + $0x6c] sm:$0xf]
        %v675 = vld [vmem:[%s229 + $0x70] sm:$0x1]
        %v676 = vld [vmem:[%s229 + $0x80] sm:$0xe]
        %v677 = vld [vmem:[%s229 + $0x84] sm:$0xf]
        %v678 = vld [vmem:[%s229 + $0x88] sm:$0x1]
        %v679 = vld [vmem:[%s229 + $0x98] sm:$0xe]
        %v680 = vld [vmem:[%s229 + $0x9c] sm:$0xf]
        %v681 = vld [vmem:[%s229 + $0xa0] sm:$0x1]
        %v682 = vld [vmem:[%s229 + $0xb0] sm:$0xe]
        %v683 = vld [vmem:[%s229 + $0xb4] sm:$0xf]
        %v684 = vld [vmem:[%s229 + $0xb8] sm:$0x1]
        %vm709 = vcmask 1042432
        %vm710 = vcmask 1046532
        %vm711 = vmor %vm709, %vm710
        %v712 = vrot.slane %v661, 5
        %v713 = vrot.slane %v712, 4
        %v714 = vrot.slane %v662, 5
        %v715 = vsel %vm711, %v713, %v714
        %v716 = vrot.slane %v714, 4
        %v717 = vrot.slane %v663, 5
        %v718 = vsel %vm711, %v716, %v717
        %v719 = vrot.slane %v664, 5
        %v720 = vrot.slane %v719, 4
        %v721 = vrot.slane %v665, 5
        %v722 = vsel %vm711, %v720, %v721
        %v723 = vrot.slane %v721, 4
        %v724 = vrot.slane %v666, 5
        %v725 = vsel %vm711, %v723, %v724
        %v726 = vrot.slane %v667, 5
        %v727 = vrot.slane %v726, 4
        %v728 = vrot.slane %v668, 5
        %v729 = vsel %vm711, %v727, %v728
        %v730 = vrot.slane %v728, 4
        %v731 = vrot.slane %v669, 5
        %v732 = vsel %vm711, %v730, %v731
        %v733 = vrot.slane %v670, 5
        %v734 = vrot.slane %v733, 4
        %v735 = vrot.slane %v671, 5
        %v736 = vsel %vm711, %v734, %v735
        %v737 = vrot.slane %v735, 4
        %v738 = vrot.slane %v672, 5
        %v739 = vsel %vm711, %v737, %v738
        %v740 = vrot.slane %v673, 5
        %v741 = vrot.slane %v740, 4
        %v742 = vrot.slane %v674, 5
        %v743 = vsel %vm711, %v741, %v742
        %v744 = vrot.slane %v742, 4
        %v745 = vrot.slane %v675, 5
        %v746 = vsel %vm711, %v744, %v745
        %v747 = vrot.slane %v676, 5
        %v748 = vrot.slane %v747, 4
        %v749 = vrot.slane %v677, 5
        %v750 = vsel %vm711, %v748, %v749
        %v751 = vrot.slane %v749, 4
        %v752 = vrot.slane %v678, 5
        %v753 = vsel %vm711, %v751, %v752
        %v754 = vrot.slane %v679, 5
        %v755 = vrot.slane %v754, 4
        %v756 = vrot.slane %v680, 5
        %v757 = vsel %vm711, %v755, %v756
        %v758 = vrot.slane %v756, 4
        %v759 = vrot.slane %v681, 5
        %v760 = vsel %vm711, %v758, %v759
        %v761 = vrot.slane %v682, 5
        %v762 = vrot.slane %v761, 4
        %v763 = vrot.slane %v683, 5
        %v764 = vsel %vm711, %v762, %v763
        %v765 = vrot.slane %v763, 4
        %v766 = vrot.slane %v684, 5
        %v767 = vsel %vm711, %v765, %v766
        %s768 = scalar_lea.vmem %s219, 16
        %v769 = vld [vmem:[%s768] sm:$0xf]
        %v770 = vld [vmem:[%s768 + $0x4] sm:$0xf]
        %v771 = vunpack.c.l.b16 %v715
        %v772 = vunpack.c.l.b16 %v718
        %v773 = vunpack.c.l.b16 %v722
        %v774 = vunpack.c.l.b16 %v725
        %v775 = vunpack.c.l.b16 %v729
        %v776 = vunpack.c.l.b16 %v732
        %v777 = vunpack.c.l.b16 %v736
        %v778 = vunpack.c.l.b16 %v739
        %v779 = vunpack.c.l.b16 %v743
        %v780 = vunpack.c.l.b16 %v746
        %v781 = vunpack.c.l.b16 %v750
        %v782 = vunpack.c.l.b16 %v753
        %v783 = vunpack.c.l.b16 %v757
        %v784 = vunpack.c.l.b16 %v760
        %v785 = vunpack.c.l.b16 %v764
        %v786 = vunpack.c.l.b16 %v767
        %v787 = vpack.c.b16 %v772, %v771
        %v788 = vpack.c.b16 %v774, %v773
        %v789 = vpack.c.b16 %v776, %v775
        %v790 = vpack.c.b16 %v778, %v777
        %v791 = vpack.c.b16 %v780, %v779
        %v792 = vpack.c.b16 %v782, %v781
        %v793 = vpack.c.b16 %v784, %v783
        %v794 = vpack.c.b16 %v786, %v785
        %v797 = vunpack.c.l.b16 %v769
        %v798 = vunpack.c.l.b16 %v770
        %v799 = vpack.c.b16 %v798, %v797
        %v802 = vsel %vm388, %v787, 0
        %v805 = vsel %vm388, %v788, 0
        %v808 = vsel %vm388, %v789, 0
        %v811 = vsel %vm388, %v790, 0
        %v814 = vsel %vm388, %v791, 0
        %v817 = vsel %vm388, %v792, 0
        %v820 = vsel %vm388, %v793, 0
        %v823 = vsel %vm388, %v794, 0
        %825 = vmatprep.subr.bf16.mxu0 0
        %826 = vmatpush1.bf16.msra.mxu0 %v799
        %827 = vmatprep.subr.bf16.mxu0 0
        %828 = vmatpush1.bf16.msra.mxu0 0
        %829 = vmatprep.subr.bf16.mxu0 0
        %830 = vmatpush1.bf16.msra.mxu0 0
        %831 = vmatprep.subr.bf16.mxu0 0
        %832 = vmatpush1.bf16.msra.mxu0 0
        %833 = vmatprep.subr.bf16.mxu0 0
        %834 = vmatpush1.bf16.msra.mxu0 0
        %835 = vmatprep.subr.bf16.mxu0 0
        %836 = vmatpush1.bf16.msra.mxu0 0
        %837 = vmatprep.subr.bf16.mxu0 0
        %838 = vmatpush1.bf16.msra.mxu0 0
        %839 = vmatprep.subr.bf16.mxu0 0
        %840 = vmatpush1.bf16.msra.mxu0 0
        %841 = vmatprep.subr.bf16.mxu0 0
        %842 = vmatpush1.bf16.msra.mxu0 0
        %843 = vmatprep.subr.bf16.mxu0 0
        %844 = vmatpush1.bf16.msra.mxu0 0
        %845 = vmatprep.subr.bf16.mxu0 0
        %846 = vmatpush1.bf16.msra.mxu0 0
        %847 = vmatprep.subr.bf16.mxu0 0
        %848 = vmatpush1.bf16.msra.mxu0 0
        %849 = vmatprep.subr.bf16.mxu0 0
        %850 = vmatpush1.bf16.msra.mxu0 0
        %851 = vmatprep.subr.bf16.mxu0 0
        %852 = vmatpush1.bf16.msra.mxu0 0
        %853 = vmatprep.subr.bf16.mxu0 0
        %854 = vmatpush1.bf16.msra.mxu0 0
        %855 = vmatprep.subr.bf16.mxu0 0
        %856 = vmatpush1.bf16.msra.mxu0 0
        %857 = vmatprep.mubr.bf16.mxu0 0
        %858 = vmatmul.mubr.bf16.gmra.mrb[0].mxu0 %v802
        %v859 = vpop.f32.mrb[0].mxu0
        %v860 = vadd.f32 0.0, %v859
        %v861 = vpop.f32.mrb[0].mxu0
        %v862 = vpop.f32.mrb[0].mxu0
        %v863 = vadd.f32 0.0, %v862
        %v864 = vpop.f32.mrb[0].mxu0
        %865 = vmatprep.mubr.bf16.mxu0 0
        %866 = vmatmul.mubr.bf16.gmra.mrb[0].mxu0 %v805
        %v867 = vpop.f32.mrb[0].mxu0
        %v868 = vadd.f32 0.0, %v867
        %v869 = vpop.f32.mrb[0].mxu0
        %v870 = vpop.f32.mrb[0].mxu0
        %v871 = vadd.f32 0.0, %v870
        %v872 = vpop.f32.mrb[0].mxu0
        %873 = vmatprep.mubr.bf16.mxu0 0
        %874 = vmatmul.mubr.bf16.gmra.mrb[0].mxu0 %v808
        %v875 = vpop.f32.mrb[0].mxu0
        %v876 = vadd.f32 0.0, %v875
        %v877 = vpop.f32.mrb[0].mxu0
        %v878 = vpop.f32.mrb[0].mxu0
        %v879 = vadd.f32 0.0, %v878
        %v880 = vpop.f32.mrb[0].mxu0
        %881 = vmatprep.mubr.bf16.mxu0 0
        %882 = vmatmul.mubr.bf16.gmra.mrb[0].mxu0 %v811
        %v883 = vpop.f32.mrb[0].mxu0
        %v884 = vadd.f32 0.0, %v883
        %v885 = vpop.f32.mrb[0].mxu0
        %v886 = vpop.f32.mrb[0].mxu0
        %v887 = vadd.f32 0.0, %v886
        %v888 = vpop.f32.mrb[0].mxu0
        %889 = vmatprep.mubr.bf16.mxu0 0
        %890 = vmatmul.mubr.bf16.gmra.mrb[0].mxu0 %v814
        %v891 = vpop.f32.mrb[0].mxu0
        %v892 = vadd.f32 0.0, %v891
        %v893 = vpop.f32.mrb[0].mxu0
        %v894 = vpop.f32.mrb[0].mxu0
        %v895 = vadd.f32 0.0, %v894
        %v896 = vpop.f32.mrb[0].mxu0
        %897 = vmatprep.mubr.bf16.mxu0 0
        %898 = vmatmul.mubr.bf16.gmra.mrb[0].mxu0 %v817
        %v899 = vpop.f32.mrb[0].mxu0
        %v900 = vadd.f32 0.0, %v899
        %v901 = vpop.f32.mrb[0].mxu0
        %v902 = vpop.f32.mrb[0].mxu0
        %v903 = vadd.f32 0.0, %v902
        %v904 = vpop.f32.mrb[0].mxu0
        %905 = vmatprep.mubr.bf16.mxu0 0
        %906 = vmatmul.mubr.bf16.gmra.mrb[0].mxu0 %v820
        %v907 = vpop.f32.mrb[0].mxu0
        %v908 = vadd.f32 0.0, %v907
        %v909 = vpop.f32.mrb[0].mxu0
        %v910 = vpop.f32.mrb[0].mxu0
        %v911 = vadd.f32 0.0, %v910
        %v912 = vpop.f32.mrb[0].mxu0
        %913 = vmatprep.mubr.bf16.mxu0 0
        %914 = vmatmul.mubr.bf16.gmra.mrb[0].mxu0 %v823
        %v915 = vpop.f32.mrb[0].mxu0
        %v916 = vadd.f32 0.0, %v915
        %v917 = vpop.f32.mrb[0].mxu0
        %v918 = vpop.f32.mrb[0].mxu0
        %v919 = vadd.f32 0.0, %v918
        %v920 = vpop.f32.mrb[0].mxu0
        %921 = vdwg.mxu0
        %v922 = vadd.f32 %v599, %v860
        %v923 = vadd.f32 %v602, %v863
        %v924 = vadd.f32 %v607, %v868
        %v925 = vadd.f32 %v610, %v871
        %v926 = vadd.f32 %v615, %v876
        %v927 = vadd.f32 %v618, %v879
        %v928 = vadd.f32 %v623, %v884
        %v929 = vadd.f32 %v626, %v887
        %v930 = vadd.f32 %v631, %v892
        %v931 = vadd.f32 %v634, %v895
        %v932 = vadd.f32 %v639, %v900
        %v933 = vadd.f32 %v642, %v903
        %v934 = vadd.f32 %v647, %v908
        %v935 = vadd.f32 %v650, %v911
        %v936 = vadd.f32 %v655, %v916
        %v937 = vadd.f32 %v658, %v919
        %s938 = sadd.s32 %s225, 16
        %s939 = smul.u32 %s938, 6
        %s940 = smul.addr %s939, 4
        %s941 = scalar_lea.vmem %s215, %s940
        %v942 = vld [vmem:[%s941 + $0x4] sm:$0x8]
        %v943 = vld [vmem:[%s941 + $0x8] sm:$0xf]
        %v944 = vld [vmem:[%s941 + $0xc] sm:$0x7]
        %v945 = vld [vmem:[%s941 + $0x1c] sm:$0x8]
        %v946 = vld [vmem:[%s941 + $0x20] sm:$0xf]
        %v947 = vld [vmem:[%s941 + $0x24] sm:$0x7]
        %v948 = vld [vmem:[%s941 + $0x34] sm:$0x8]
        %v949 = vld [vmem:[%s941 + $0x38] sm:$0xf]
        %v950 = vld [vmem:[%s941 + $0x3c] sm:$0x7]
        %v951 = vld [vmem:[%s941 + $0x4c] sm:$0x8]
        %v952 = vld [vmem:[%s941 + $0x50] sm:$0xf]
        %v953 = vld [vmem:[%s941 + $0x54] sm:$0x7]
        %v954 = vld [vmem:[%s941 + $0x64] sm:$0x8]
        %v955 = vld [vmem:[%s941 + $0x68] sm:$0xf]
        %v956 = vld [vmem:[%s941 + $0x6c] sm:$0x7]
        %v957 = vld [vmem:[%s941 + $0x7c] sm:$0x8]
        %v958 = vld [vmem:[%s941 + $0x80] sm:$0xf]
        %v959 = vld [vmem:[%s941 + $0x84] sm:$0x7]
        %v960 = vld [vmem:[%s941 + $0x94] sm:$0x8]
        %v961 = vld [vmem:[%s941 + $0x98] sm:$0xf]
        %v962 = vld [vmem:[%s941 + $0x9c] sm:$0x7]
        %v963 = vld [vmem:[%s941 + $0xac] sm:$0x8]
        %v964 = vld [vmem:[%s941 + $0xb0] sm:$0xf]
        %v965 = vld [vmem:[%s941 + $0xb4] sm:$0x7]
        %v990 = vrot.slane %v942, 7
        %v991 = vrot.slane %v990, 4
        %v992 = vrot.slane %v943, 7
        %v993 = vsel %vm280, %v991, %v992
        %v994 = vrot.slane %v992, 4
        %v995 = vrot.slane %v944, 7
        %v996 = vsel %vm280, %v994, %v995
        %v997 = vrot.slane %v945, 7
        %v998 = vrot.slane %v997, 4
        %v999 = vrot.slane %v946, 7
        %v1000 = vsel %vm280, %v998, %v999
        %v1001 = vrot.slane %v999, 4
        %v1002 = vrot.slane %v947, 7
        %v1003 = vsel %vm280, %v1001, %v1002
        %v1004 = vrot.slane %v948, 7
        %v1005 = vrot.slane %v1004, 4
        %v1006 = vrot.slane %v949, 7
        %v1007 = vsel %vm280, %v1005, %v1006
        %v1008 = vrot.slane %v1006, 4
        %v1009 = vrot.slane %v950, 7
        %v1010 = vsel %vm280, %v1008, %v1009
        %v1011 = vrot.slane %v951, 7
        %v1012 = vrot.slane %v1011, 4
        %v1013 = vrot.slane %v952, 7
        %v1014 = vsel %vm280, %v1012, %v1013
        %v1015 = vrot.slane %v1013, 4
        %v1016 = vrot.slane %v953, 7
        %v1017 = vsel %vm280, %v1015, %v1016
        %v1018 = vrot.slane %v954, 7
        %v1019 = vrot.slane %v1018, 4
        %v1020 = vrot.slane %v955, 7
        %v1021 = vsel %vm280, %v1019, %v1020
        %v1022 = vrot.slane %v1020, 4
        %v1023 = vrot.slane %v956, 7
        %v1024 = vsel %vm280, %v1022, %v1023
        %v1025 = vrot.slane %v957, 7
        %v1026 = vrot.slane %v1025, 4
        %v1027 = vrot.slane %v958, 7
        %v1028 = vsel %vm280, %v1026, %v1027
        %v1029 = vrot.slane %v1027, 4
        %v1030 = vrot.slane %v959, 7
        %v1031 = vsel %vm280, %v1029, %v1030
        %v1032 = vrot.slane %v960, 7
        %v1033 = vrot.slane %v1032, 4
        %v1034 = vrot.slane %v961, 7
        %v1035 = vsel %vm280, %v1033, %v1034
        %v1036 = vrot.slane %v1034, 4
        %v1037 = vrot.slane %v962, 7
        %v1038 = vsel %vm280, %v1036, %v1037
        %v1039 = vrot.slane %v963, 7
        %v1040 = vrot.slane %v1039, 4
        %v1041 = vrot.slane %v964, 7
        %v1042 = vsel %vm280, %v1040, %v1041
        %v1043 = vrot.slane %v1041, 4
        %v1044 = vrot.slane %v965, 7
        %v1045 = vsel %vm280, %v1043, %v1044
        %s1046 = scalar_lea.vmem %s219, 24
        %v1047 = vld [vmem:[%s1046] sm:$0xf]
        %v1048 = vld [vmem:[%s1046 + $0x4] sm:$0xf]
        %v1049 = vunpack.c.l.b16 %v993
        %v1050 = vunpack.c.l.b16 %v996
        %v1051 = vunpack.c.l.b16 %v1000
        %v1052 = vunpack.c.l.b16 %v1003
        %v1053 = vunpack.c.l.b16 %v1007
        %v1054 = vunpack.c.l.b16 %v1010
        %v1055 = vunpack.c.l.b16 %v1014
        %v1056 = vunpack.c.l.b16 %v1017
        %v1057 = vunpack.c.l.b16 %v1021
        %v1058 = vunpack.c.l.b16 %v1024
        %v1059 = vunpack.c.l.b16 %v1028
        %v1060 = vunpack.c.l.b16 %v1031
        %v1061 = vunpack.c.l.b16 %v1035
        %v1062 = vunpack.c.l.b16 %v1038
        %v1063 = vunpack.c.l.b16 %v1042
        %v1064 = vunpack.c.l.b16 %v1045
        %v1065 = vpack.c.b16 %v1050, %v1049
        %v1066 = vpack.c.b16 %v1052, %v1051
        %v1067 = vpack.c.b16 %v1054, %v1053
        %v1068 = vpack.c.b16 %v1056, %v1055
        %v1069 = vpack.c.b16 %v1058, %v1057
        %v1070 = vpack.c.b16 %v1060, %v1059
        %v1071 = vpack.c.b16 %v1062, %v1061
        %v1072 = vpack.c.b16 %v1064, %v1063
        %v1075 = vunpack.c.l.b16 %v1047
        %v1076 = vunpack.c.l.b16 %v1048
        %v1077 = vpack.c.b16 %v1076, %v1075
        %v1080 = vsel %vm388, %v1065, 0
        %v1083 = vsel %vm388, %v1066, 0
        %v1086 = vsel %vm388, %v1067, 0
        %v1089 = vsel %vm388, %v1068, 0
        %v1092 = vsel %vm388, %v1069, 0
        %v1095 = vsel %vm388, %v1070, 0
        %v1098 = vsel %vm388, %v1071, 0
        %v1101 = vsel %vm388, %v1072, 0
        %1103 = vmatprep.subr.bf16.mxu0 0
        %1104 = vmatpush1.bf16.msra.mxu0 %v1077
        %1105 = vmatprep.subr.bf16.mxu0 0
        %1106 = vmatpush1.bf16.msra.mxu0 0
        %1107 = vmatprep.subr.bf16.mxu0 0
        %1108 = vmatpush1.bf16.msra.mxu0 0
        %1109 = vmatprep.subr.bf16.mxu0 0
        %1110 = vmatpush1.bf16.msra.mxu0 0
        %1111 = vmatprep.subr.bf16.mxu0 0
        %1112 = vmatpush1.bf16.msra.mxu0 0
        %1113 = vmatprep.subr.bf16.mxu0 0
        %1114 = vmatpush1.bf16.msra.mxu0 0
        %1115 = vmatprep.subr.bf16.mxu0 0
        %1116 = vmatpush1.bf16.msra.mxu0 0
        %1117 = vmatprep.subr.bf16.mxu0 0
        %1118 = vmatpush1.bf16.msra.mxu0 0
        %1119 = vmatprep.subr.bf16.mxu0 0
        %1120 = vmatpush1.bf16.msra.mxu0 0
        %1121 = vmatprep.subr.bf16.mxu0 0
        %1122 = vmatpush1.bf16.msra.mxu0 0
        %1123 = vmatprep.subr.bf16.mxu0 0
        %1124 = vmatpush1.bf16.msra.mxu0 0
        %1125 = vmatprep.subr.bf16.mxu0 0
        %1126 = vmatpush1.bf16.msra.mxu0 0
        %1127 = vmatprep.subr.bf16.mxu0 0
        %1128 = vmatpush1.bf16.msra.mxu0 0
        %1129 = vmatprep.subr.bf16.mxu0 0
        %1130 = vmatpush1.bf16.msra.mxu0 0
        %1131 = vmatprep.subr.bf16.mxu0 0
        %1132 = vmatpush1.bf16.msra.mxu0 0
        %1133 = vmatprep.subr.bf16.mxu0 0
        %1134 = vmatpush1.bf16.msra.mxu0 0
        %1135 = vmatprep.mubr.bf16.mxu0 0
        %1136 = vmatmul.mubr.bf16.gmra.mrb[0].mxu0 %v1080
        %v1137 = vpop.f32.mrb[0].mxu0
        %v1138 = vadd.f32 0.0, %v1137
        %v1139 = vpop.f32.mrb[0].mxu0
        %v1140 = vpop.f32.mrb[0].mxu0
        %v1141 = vadd.f32 0.0, %v1140
        %v1142 = vpop.f32.mrb[0].mxu0
        %1143 = vmatprep.mubr.bf16.mxu0 0
        %1144 = vmatmul.mubr.bf16.gmra.mrb[0].mxu0 %v1083
        %v1145 = vpop.f32.mrb[0].mxu0
        %v1146 = vadd.f32 0.0, %v1145
        %v1147 = vpop.f32.mrb[0].mxu0
        %v1148 = vpop.f32.mrb[0].mxu0
        %v1149 = vadd.f32 0.0, %v1148
        %v1150 = vpop.f32.mrb[0].mxu0
        %1151 = vmatprep.mubr.bf16.mxu0 0
        %1152 = vmatmul.mubr.bf16.gmra.mrb[0].mxu0 %v1086
        %v1153 = vpop.f32.mrb[0].mxu0
        %v1154 = vadd.f32 0.0, %v1153
        %v1155 = vpop.f32.mrb[0].mxu0
        %v1156 = vpop.f32.mrb[0].mxu0
        %v1157 = vadd.f32 0.0, %v1156
        %v1158 = vpop.f32.mrb[0].mxu0
        %1159 = vmatprep.mubr.bf16.mxu0 0
        %1160 = vmatmul.mubr.bf16.gmra.mrb[0].mxu0 %v1089
        %v1161 = vpop.f32.mrb[0].mxu0
        %v1162 = vadd.f32 0.0, %v1161
        %v1163 = vpop.f32.mrb[0].mxu0
        %v1164 = vpop.f32.mrb[0].mxu0
        %v1165 = vadd.f32 0.0, %v1164
        %v1166 = vpop.f32.mrb[0].mxu0
        %1167 = vmatprep.mubr.bf16.mxu0 0
        %1168 = vmatmul.mubr.bf16.gmra.mrb[0].mxu0 %v1092
        %v1169 = vpop.f32.mrb[0].mxu0
        %v1170 = vadd.f32 0.0, %v1169
        %v1171 = vpop.f32.mrb[0].mxu0
        %v1172 = vpop.f32.mrb[0].mxu0
        %v1173 = vadd.f32 0.0, %v1172
        %v1174 = vpop.f32.mrb[0].mxu0
        %1175 = vmatprep.mubr.bf16.mxu0 0
        %1176 = vmatmul.mubr.bf16.gmra.mrb[0].mxu0 %v1095
        %v1177 = vpop.f32.mrb[0].mxu0
        %v1178 = vadd.f32 0.0, %v1177
        %v1179 = vpop.f32.mrb[0].mxu0
        %v1180 = vpop.f32.mrb[0].mxu0
        %v1181 = vadd.f32 0.0, %v1180
        %v1182 = vpop.f32.mrb[0].mxu0
        %1183 = vmatprep.mubr.bf16.mxu0 0
        %1184 = vmatmul.mubr.bf16.gmra.mrb[0].mxu0 %v1098
        %v1185 = vpop.f32.mrb[0].mxu0
        %v1186 = vadd.f32 0.0, %v1185
        %v1187 = vpop.f32.mrb[0].mxu0
        %v1188 = vpop.f32.mrb[0].mxu0
        %v1189 = vadd.f32 0.0, %v1188
        %v1190 = vpop.f32.mrb[0].mxu0
        %1191 = vmatprep.mubr.bf16.mxu0 0
        %1192 = vmatmul.mubr.bf16.gmra.mrb[0].mxu0 %v1101
        %v1193 = vpop.f32.mrb[0].mxu0
        %v1194 = vadd.f32 0.0, %v1193
        %v1195 = vpop.f32.mrb[0].mxu0
        %v1196 = vpop.f32.mrb[0].mxu0
        %v1197 = vadd.f32 0.0, %v1196
        %v1198 = vpop.f32.mrb[0].mxu0
        %1199 = vdwg.mxu0
        %v1200 = vadd.f32 %v922, %v1138
        %v1201 = vadd.f32 %v923, %v1141
        %v1202 = vadd.f32 %v924, %v1146
        %v1203 = vadd.f32 %v925, %v1149
        %v1204 = vadd.f32 %v926, %v1154
        %v1205 = vadd.f32 %v927, %v1157
        %v1206 = vadd.f32 %v928, %v1162
        %v1207 = vadd.f32 %v929, %v1165
        %v1208 = vadd.f32 %v930, %v1170
        %v1209 = vadd.f32 %v931, %v1173
        %v1210 = vadd.f32 %v932, %v1178
        %v1211 = vadd.f32 %v933, %v1181
        %v1212 = vadd.f32 %v934, %v1186
        %v1213 = vadd.f32 %v935, %v1189
        %v1214 = vadd.f32 %v936, %v1194
        %v1215 = vadd.f32 %v937, %v1197
        %v1216 = vld [vmem:[%s941 + $0xc] sm:$0xf]
        %v1217 = vld [vmem:[%s941 + $0x24] sm:$0xf]
        %v1218 = vld [vmem:[%s941 + $0x3c] sm:$0xf]
        %v1219 = vld [vmem:[%s941 + $0x54] sm:$0xf]
        %v1220 = vld [vmem:[%s941 + $0x6c] sm:$0xf]
        %v1221 = vld [vmem:[%s941 + $0x84] sm:$0xf]
        %v1222 = vld [vmem:[%s941 + $0x9c] sm:$0xf]
        %v1223 = vld [vmem:[%s941 + $0xb4] sm:$0xf]
        %s1224 = scalar_lea.vmem %s219, 32
        %v1225 = vld [vmem:[%s1224] sm:$0xf]
        %v1226 = vld [vmem:[%s1224 + $0x4] sm:$0xf]
        %v1235 = vunpack.c.l.b16 %v943
        %v1236 = vunpack.c.l.b16 %v1216
        %v1237 = vunpack.c.l.b16 %v946
        %v1238 = vunpack.c.l.b16 %v1217
        %v1239 = vunpack.c.l.b16 %v949
        %v1240 = vunpack.c.l.b16 %v1218
        %v1241 = vunpack.c.l.b16 %v952
        %v1242 = vunpack.c.l.b16 %v1219
        %v1243 = vunpack.c.l.b16 %v955
        %v1244 = vunpack.c.l.b16 %v1220
        %v1245 = vunpack.c.l.b16 %v958
        %v1246 = vunpack.c.l.b16 %v1221
        %v1247 = vunpack.c.l.b16 %v961
        %v1248 = vunpack.c.l.b16 %v1222
        %v1249 = vunpack.c.l.b16 %v964
        %v1250 = vunpack.c.l.b16 %v1223
        %v1251 = vpack.c.b16 %v1236, %v1235
        %v1252 = vpack.c.b16 %v1238, %v1237
        %v1253 = vpack.c.b16 %v1240, %v1239
        %v1254 = vpack.c.b16 %v1242, %v1241
        %v1255 = vpack.c.b16 %v1244, %v1243
        %v1256 = vpack.c.b16 %v1246, %v1245
        %v1257 = vpack.c.b16 %v1248, %v1247
        %v1258 = vpack.c.b16 %v1250, %v1249
        %v1261 = vunpack.c.l.b16 %v1225
        %v1262 = vunpack.c.l.b16 %v1226
        %v1263 = vpack.c.b16 %v1262, %v1261
        %v1266 = vsel %vm388, %v1251, 0
        %v1269 = vsel %vm388, %v1252, 0
        %v1272 = vsel %vm388, %v1253, 0
        %v1275 = vsel %vm388, %v1254, 0
        %v1278 = vsel %vm388, %v1255, 0
        %v1281 = vsel %vm388, %v1256, 0
        %v1284 = vsel %vm388, %v1257, 0
        %v1287 = vsel %vm388, %v1258, 0
        %1289 = vmatprep.subr.bf16.mxu0 0
        %1290 = vmatpush1.bf16.msra.mxu0 %v1263
        %1291 = vmatprep.subr.bf16.mxu0 0
        %1292 = vmatpush1.bf16.msra.mxu0 0
        %1293 = vmatprep.subr.bf16.mxu0 0
        %1294 = vmatpush1.bf16.msra.mxu0 0
        %1295 = vmatprep.subr.bf16.mxu0 0
        %1296 = vmatpush1.bf16.msra.mxu0 0
        %1297 = vmatprep.subr.bf16.mxu0 0
        %1298 = vmatpush1.bf16.msra.mxu0 0
        %1299 = vmatprep.subr.bf16.mxu0 0
        %1300 = vmatpush1.bf16.msra.mxu0 0
        %1301 = vmatprep.subr.bf16.mxu0 0
        %1302 = vmatpush1.bf16.msra.mxu0 0
        %1303 = vmatprep.subr.bf16.mxu0 0
        %1304 = vmatpush1.bf16.msra.mxu0 0
        %1305 = vmatprep.subr.bf16.mxu0 0
        %1306 = vmatpush1.bf16.msra.mxu0 0
        %1307 = vmatprep.subr.bf16.mxu0 0
        %1308 = vmatpush1.bf16.msra.mxu0 0
        %1309 = vmatprep.subr.bf16.mxu0 0
        %1310 = vmatpush1.bf16.msra.mxu0 0
        %1311 = vmatprep.subr.bf16.mxu0 0
        %1312 = vmatpush1.bf16.msra.mxu0 0
        %1313 = vmatprep.subr.bf16.mxu0 0
        %1314 = vmatpush1.bf16.msra.mxu0 0
        %1315 = vmatprep.subr.bf16.mxu0 0
        %1316 = vmatpush1.bf16.msra.mxu0 0
        %1317 = vmatprep.subr.bf16.mxu0 0
        %1318 = vmatpush1.bf16.msra.mxu0 0
        %1319 = vmatprep.subr.bf16.mxu0 0
        %1320 = vmatpush1.bf16.msra.mxu0 0
        %1321 = vmatprep.mubr.bf16.mxu0 0
        %1322 = vmatmul.mubr.bf16.gmra.mrb[0].mxu0 %v1266
        %v1323 = vpop.f32.mrb[0].mxu0
        %v1324 = vadd.f32 0.0, %v1323
        %v1325 = vpop.f32.mrb[0].mxu0
        %v1326 = vpop.f32.mrb[0].mxu0
        %v1327 = vadd.f32 0.0, %v1326
        %v1328 = vpop.f32.mrb[0].mxu0
        %1329 = vmatprep.mubr.bf16.mxu0 0
        %1330 = vmatmul.mubr.bf16.gmra.mrb[0].mxu0 %v1269
        %v1331 = vpop.f32.mrb[0].mxu0
        %v1332 = vadd.f32 0.0, %v1331
        %v1333 = vpop.f32.mrb[0].mxu0
        %v1334 = vpop.f32.mrb[0].mxu0
        %v1335 = vadd.f32 0.0, %v1334
        %v1336 = vpop.f32.mrb[0].mxu0
        %1337 = vmatprep.mubr.bf16.mxu0 0
        %1338 = vmatmul.mubr.bf16.gmra.mrb[0].mxu0 %v1272
        %v1339 = vpop.f32.mrb[0].mxu0
        %v1340 = vadd.f32 0.0, %v1339
        %v1341 = vpop.f32.mrb[0].mxu0
        %v1342 = vpop.f32.mrb[0].mxu0
        %v1343 = vadd.f32 0.0, %v1342
        %v1344 = vpop.f32.mrb[0].mxu0
        %1345 = vmatprep.mubr.bf16.mxu0 0
        %1346 = vmatmul.mubr.bf16.gmra.mrb[0].mxu0 %v1275
        %v1347 = vpop.f32.mrb[0].mxu0
        %v1348 = vadd.f32 0.0, %v1347
        %v1349 = vpop.f32.mrb[0].mxu0
        %v1350 = vpop.f32.mrb[0].mxu0
        %v1351 = vadd.f32 0.0, %v1350
        %v1352 = vpop.f32.mrb[0].mxu0
        %1353 = vmatprep.mubr.bf16.mxu0 0
        %1354 = vmatmul.mubr.bf16.gmra.mrb[0].mxu0 %v1278
        %v1355 = vpop.f32.mrb[0].mxu0
        %v1356 = vadd.f32 0.0, %v1355
        %v1357 = vpop.f32.mrb[0].mxu0
        %v1358 = vpop.f32.mrb[0].mxu0
        %v1359 = vadd.f32 0.0, %v1358
        %v1360 = vpop.f32.mrb[0].mxu0
        %1361 = vmatprep.mubr.bf16.mxu0 0
        %1362 = vmatmul.mubr.bf16.gmra.mrb[0].mxu0 %v1281
        %v1363 = vpop.f32.mrb[0].mxu0
        %v1364 = vadd.f32 0.0, %v1363
        %v1365 = vpop.f32.mrb[0].mxu0
        %v1366 = vpop.f32.mrb[0].mxu0
        %v1367 = vadd.f32 0.0, %v1366
        %v1368 = vpop.f32.mrb[0].mxu0
        %1369 = vmatprep.mubr.bf16.mxu0 0
        %1370 = vmatmul.mubr.bf16.gmra.mrb[0].mxu0 %v1284
        %v1371 = vpop.f32.mrb[0].mxu0
        %v1372 = vadd.f32 0.0, %v1371
        %v1373 = vpop.f32.mrb[0].mxu0
        %v1374 = vpop.f32.mrb[0].mxu0
        %v1375 = vadd.f32 0.0, %v1374
        %v1376 = vpop.f32.mrb[0].mxu0
        %1377 = vmatprep.mubr.bf16.mxu0 0
        %1378 = vmatmul.mubr.bf16.gmra.mrb[0].mxu0 %v1287
        %v1379 = vpop.f32.mrb[0].mxu0
        %v1380 = vadd.f32 0.0, %v1379
        %v1381 = vpop.f32.mrb[0].mxu0
        %v1382 = vpop.f32.mrb[0].mxu0
        %v1383 = vadd.f32 0.0, %v1382
        %v1384 = vpop.f32.mrb[0].mxu0
        %1385 = vdwg.mxu0
        %v1386 = vadd.f32 %v1200, %v1324
        %v1387 = vadd.f32 %v1201, %v1327
        %v1388 = vadd.f32 %v1202, %v1332
        %v1389 = vadd.f32 %v1203, %v1335
        %v1390 = vadd.f32 %v1204, %v1340
        %v1391 = vadd.f32 %v1205, %v1343
        %v1392 = vadd.f32 %v1206, %v1348
        %v1393 = vadd.f32 %v1207, %v1351
        %v1394 = vadd.f32 %v1208, %v1356
        %v1395 = vadd.f32 %v1209, %v1359
        %v1396 = vadd.f32 %v1210, %v1364
        %v1397 = vadd.f32 %v1211, %v1367
        %v1398 = vadd.f32 %v1212, %v1372
        %v1399 = vadd.f32 %v1213, %v1375
        %v1400 = vadd.f32 %v1214, %v1380
        %v1401 = vadd.f32 %v1215, %v1383
        %v1402 = vld [vmem:[%s941 + $0x8] sm:$0xe]
        %v1403 = vld [vmem:[%s941 + $0xc] sm:$0xf]
        %v1404 = vld [vmem:[%s941 + $0x10] sm:$0x1]
        %v1405 = vld [vmem:[%s941 + $0x20] sm:$0xe]
        %v1406 = vld [vmem:[%s941 + $0x24] sm:$0xf]
        %v1407 = vld [vmem:[%s941 + $0x28] sm:$0x1]
        %v1408 = vld [vmem:[%s941 + $0x38] sm:$0xe]
        %v1409 = vld [vmem:[%s941 + $0x3c] sm:$0xf]
        %v1410 = vld [vmem:[%s941 + $0x40] sm:$0x1]
        %v1411 = vld [vmem:[%s941 + $0x50] sm:$0xe]
        %v1412 = vld [vmem:[%s941 + $0x54] sm:$0xf]
        %v1413 = vld [vmem:[%s941 + $0x58] sm:$0x1]
        %v1414 = vld [vmem:[%s941 + $0x68] sm:$0xe]
        %v1415 = vld [vmem:[%s941 + $0x6c] sm:$0xf]
        %v1416 = vld [vmem:[%s941 + $0x70] sm:$0x1]
        %v1417 = vld [vmem:[%s941 + $0x80] sm:$0xe]
        %v1418 = vld [vmem:[%s941 + $0x84] sm:$0xf]
        %v1419 = vld [vmem:[%s941 + $0x88] sm:$0x1]
        %v1420 = vld [vmem:[%s941 + $0x98] sm:$0xe]
        %v1421 = vld [vmem:[%s941 + $0x9c] sm:$0xf]
        %v1422 = vld [vmem:[%s941 + $0xa0] sm:$0x1]
        %v1423 = vld [vmem:[%s941 + $0xb0] sm:$0xe]
        %v1424 = vld [vmem:[%s941 + $0xb4] sm:$0xf]
        %v1425 = vld [vmem:[%s941 + $0xb8] sm:$0x1]
        %v1450 = vrot.slane %v1402, 5
        %v1451 = vrot.slane %v1450, 4
        %v1452 = vrot.slane %v1403, 5
        %v1453 = vsel %vm711, %v1451, %v1452
        %v1454 = vrot.slane %v1452, 4
        %v1455 = vrot.slane %v1404, 5
        %v1456 = vsel %vm711, %v1454, %v1455
        %v1457 = vrot.slane %v1405, 5
        %v1458 = vrot.slane %v1457, 4
        %v1459 = vrot.slane %v1406, 5
        %v1460 = vsel %vm711, %v1458, %v1459
        %v1461 = vrot.slane %v1459, 4
        %v1462 = vrot.slane %v1407, 5
        %v1463 = vsel %vm711, %v1461, %v1462
        %v1464 = vrot.slane %v1408, 5
        %v1465 = vrot.slane %v1464, 4
        %v1466 = vrot.slane %v1409, 5
        %v1467 = vsel %vm711, %v1465, %v1466
        %v1468 = vrot.slane %v1466, 4
        %v1469 = vrot.slane %v1410, 5
        %v1470 = vsel %vm711, %v1468, %v1469
        %v1471 = vrot.slane %v1411, 5
        %v1472 = vrot.slane %v1471, 4
        %v1473 = vrot.slane %v1412, 5
        %v1474 = vsel %vm711, %v1472, %v1473
        %v1475 = vrot.slane %v1473, 4
        %v1476 = vrot.slane %v1413, 5
        %v1477 = vsel %vm711, %v1475, %v1476
        %v1478 = vrot.slane %v1414, 5
        %v1479 = vrot.slane %v1478, 4
        %v1480 = vrot.slane %v1415, 5
        %v1481 = vsel %vm711, %v1479, %v1480
        %v1482 = vrot.slane %v1480, 4
        %v1483 = vrot.slane %v1416, 5
        %v1484 = vsel %vm711, %v1482, %v1483
        %v1485 = vrot.slane %v1417, 5
        %v1486 = vrot.slane %v1485, 4
        %v1487 = vrot.slane %v1418, 5
        %v1488 = vsel %vm711, %v1486, %v1487
        %v1489 = vrot.slane %v1487, 4
        %v1490 = vrot.slane %v1419, 5
        %v1491 = vsel %vm711, %v1489, %v1490
        %v1492 = vrot.slane %v1420, 5
        %v1493 = vrot.slane %v1492, 4
        %v1494 = vrot.slane %v1421, 5
        %v1495 = vsel %vm711, %v1493, %v1494
        %v1496 = vrot.slane %v1494, 4
        %v1497 = vrot.slane %v1422, 5
        %v1498 = vsel %vm711, %v1496, %v1497
        %v1499 = vrot.slane %v1423, 5
        %v1500 = vrot.slane %v1499, 4
        %v1501 = vrot.slane %v1424, 5
        %v1502 = vsel %vm711, %v1500, %v1501
        %v1503 = vrot.slane %v1501, 4
        %v1504 = vrot.slane %v1425, 5
        %v1505 = vsel %vm711, %v1503, %v1504
        %s1506 = scalar_lea.vmem %s219, 40
        %v1507 = vld [vmem:[%s1506] sm:$0xf]
        %v1508 = vld [vmem:[%s1506 + $0x4] sm:$0xf]
        %v1509 = vunpack.c.l.b16 %v1453
        %v1510 = vunpack.c.l.b16 %v1456
        %v1511 = vunpack.c.l.b16 %v1460
        %v1512 = vunpack.c.l.b16 %v1463
        %v1513 = vunpack.c.l.b16 %v1467
        %v1514 = vunpack.c.l.b16 %v1470
        %v1515 = vunpack.c.l.b16 %v1474
        %v1516 = vunpack.c.l.b16 %v1477
        %v1517 = vunpack.c.l.b16 %v1481
        %v1518 = vunpack.c.l.b16 %v1484
        %v1519 = vunpack.c.l.b16 %v1488
        %v1520 = vunpack.c.l.b16 %v1491
        %v1521 = vunpack.c.l.b16 %v1495
        %v1522 = vunpack.c.l.b16 %v1498
        %v1523 = vunpack.c.l.b16 %v1502
        %v1524 = vunpack.c.l.b16 %v1505
        %v1525 = vpack.c.b16 %v1510, %v1509
        %v1526 = vpack.c.b16 %v1512, %v1511
        %v1527 = vpack.c.b16 %v1514, %v1513
        %v1528 = vpack.c.b16 %v1516, %v1515
        %v1529 = vpack.c.b16 %v1518, %v1517
        %v1530 = vpack.c.b16 %v1520, %v1519
        %v1531 = vpack.c.b16 %v1522, %v1521
        %v1532 = vpack.c.b16 %v1524, %v1523
        %v1535 = vunpack.c.l.b16 %v1507
        %v1536 = vunpack.c.l.b16 %v1508
        %v1537 = vpack.c.b16 %v1536, %v1535
        %v1540 = vsel %vm388, %v1525, 0
        %v1543 = vsel %vm388, %v1526, 0
        %v1546 = vsel %vm388, %v1527, 0
        %v1549 = vsel %vm388, %v1528, 0
        %v1552 = vsel %vm388, %v1529, 0
        %v1555 = vsel %vm388, %v1530, 0
        %v1558 = vsel %vm388, %v1531, 0
        %v1561 = vsel %vm388, %v1532, 0
        %1563 = vmatprep.subr.bf16.mxu0 0
        %1564 = vmatpush1.bf16.msra.mxu0 %v1537
        %1565 = vmatprep.subr.bf16.mxu0 0
        %1566 = vmatpush1.bf16.msra.mxu0 0
        %1567 = vmatprep.subr.bf16.mxu0 0
        %1568 = vmatpush1.bf16.msra.mxu0 0
        %1569 = vmatprep.subr.bf16.mxu0 0
        %1570 = vmatpush1.bf16.msra.mxu0 0
        %1571 = vmatprep.subr.bf16.mxu0 0
        %1572 = vmatpush1.bf16.msra.mxu0 0
        %1573 = vmatprep.subr.bf16.mxu0 0
        %1574 = vmatpush1.bf16.msra.mxu0 0
        %1575 = vmatprep.subr.bf16.mxu0 0
        %1576 = vmatpush1.bf16.msra.mxu0 0
        %1577 = vmatprep.subr.bf16.mxu0 0
        %1578 = vmatpush1.bf16.msra.mxu0 0
        %1579 = vmatprep.subr.bf16.mxu0 0
        %1580 = vmatpush1.bf16.msra.mxu0 0
        %1581 = vmatprep.subr.bf16.mxu0 0
        %1582 = vmatpush1.bf16.msra.mxu0 0
        %1583 = vmatprep.subr.bf16.mxu0 0
        %1584 = vmatpush1.bf16.msra.mxu0 0
        %1585 = vmatprep.subr.bf16.mxu0 0
        %1586 = vmatpush1.bf16.msra.mxu0 0
        %1587 = vmatprep.subr.bf16.mxu0 0
        %1588 = vmatpush1.bf16.msra.mxu0 0
        %1589 = vmatprep.subr.bf16.mxu0 0
        %1590 = vmatpush1.bf16.msra.mxu0 0
        %1591 = vmatprep.subr.bf16.mxu0 0
        %1592 = vmatpush1.bf16.msra.mxu0 0
        %1593 = vmatprep.subr.bf16.mxu0 0
        %1594 = vmatpush1.bf16.msra.mxu0 0
        %1595 = vmatprep.mubr.bf16.mxu0 0
        %1596 = vmatmul.mubr.bf16.gmra.mrb[0].mxu0 %v1540
        %v1597 = vpop.f32.mrb[0].mxu0
        %v1598 = vadd.f32 0.0, %v1597
        %v1599 = vpop.f32.mrb[0].mxu0
        %v1600 = vpop.f32.mrb[0].mxu0
        %v1601 = vadd.f32 0.0, %v1600
        %v1602 = vpop.f32.mrb[0].mxu0
        %1603 = vmatprep.mubr.bf16.mxu0 0
        %1604 = vmatmul.mubr.bf16.gmra.mrb[0].mxu0 %v1543
        %v1605 = vpop.f32.mrb[0].mxu0
        %v1606 = vadd.f32 0.0, %v1605
        %v1607 = vpop.f32.mrb[0].mxu0
        %v1608 = vpop.f32.mrb[0].mxu0
        %v1609 = vadd.f32 0.0, %v1608
        %v1610 = vpop.f32.mrb[0].mxu0
        %1611 = vmatprep.mubr.bf16.mxu0 0
        %1612 = vmatmul.mubr.bf16.gmra.mrb[0].mxu0 %v1546
        %v1613 = vpop.f32.mrb[0].mxu0
        %v1614 = vadd.f32 0.0, %v1613
        %v1615 = vpop.f32.mrb[0].mxu0
        %v1616 = vpop.f32.mrb[0].mxu0
        %v1617 = vadd.f32 0.0, %v1616
        %v1618 = vpop.f32.mrb[0].mxu0
        %1619 = vmatprep.mubr.bf16.mxu0 0
        %1620 = vmatmul.mubr.bf16.gmra.mrb[0].mxu0 %v1549
        %v1621 = vpop.f32.mrb[0].mxu0
        %v1622 = vadd.f32 0.0, %v1621
        %v1623 = vpop.f32.mrb[0].mxu0
        %v1624 = vpop.f32.mrb[0].mxu0
        %v1625 = vadd.f32 0.0, %v1624
        %v1626 = vpop.f32.mrb[0].mxu0
        %1627 = vmatprep.mubr.bf16.mxu0 0
        %1628 = vmatmul.mubr.bf16.gmra.mrb[0].mxu0 %v1552
        %v1629 = vpop.f32.mrb[0].mxu0
        %v1630 = vadd.f32 0.0, %v1629
        %v1631 = vpop.f32.mrb[0].mxu0
        %v1632 = vpop.f32.mrb[0].mxu0
        %v1633 = vadd.f32 0.0, %v1632
        %v1634 = vpop.f32.mrb[0].mxu0
        %1635 = vmatprep.mubr.bf16.mxu0 0
        %1636 = vmatmul.mubr.bf16.gmra.mrb[0].mxu0 %v1555
        %v1637 = vpop.f32.mrb[0].mxu0
        %v1638 = vadd.f32 0.0, %v1637
        %v1639 = vpop.f32.mrb[0].mxu0
        %v1640 = vpop.f32.mrb[0].mxu0
        %v1641 = vadd.f32 0.0, %v1640
        %v1642 = vpop.f32.mrb[0].mxu0
        %1643 = vmatprep.mubr.bf16.mxu0 0
        %1644 = vmatmul.mubr.bf16.gmra.mrb[0].mxu0 %v1558
        %v1645 = vpop.f32.mrb[0].mxu0
        %v1646 = vadd.f32 0.0, %v1645
        %v1647 = vpop.f32.mrb[0].mxu0
        %v1648 = vpop.f32.mrb[0].mxu0
        %v1649 = vadd.f32 0.0, %v1648
        %v1650 = vpop.f32.mrb[0].mxu0
        %1651 = vmatprep.mubr.bf16.mxu0 0
        %1652 = vmatmul.mubr.bf16.gmra.mrb[0].mxu0 %v1561
        %v1653 = vpop.f32.mrb[0].mxu0
        %v1654 = vadd.f32 0.0, %v1653
        %v1655 = vpop.f32.mrb[0].mxu0
        %v1656 = vpop.f32.mrb[0].mxu0
        %v1657 = vadd.f32 0.0, %v1656
        %v1658 = vpop.f32.mrb[0].mxu0
        %1659 = vdwg.mxu0
        %v1660 = vadd.f32 %v1386, %v1598
        %v1661 = vadd.f32 %v1387, %v1601
        %v1662 = vadd.f32 %v1388, %v1606
        %v1663 = vadd.f32 %v1389, %v1609
        %v1664 = vadd.f32 %v1390, %v1614
        %v1665 = vadd.f32 %v1391, %v1617
        %v1666 = vadd.f32 %v1392, %v1622
        %v1667 = vadd.f32 %v1393, %v1625
        %v1668 = vadd.f32 %v1394, %v1630
        %v1669 = vadd.f32 %v1395, %v1633
        %v1670 = vadd.f32 %v1396, %v1638
        %v1671 = vadd.f32 %v1397, %v1641
        %v1672 = vadd.f32 %v1398, %v1646
        %v1673 = vadd.f32 %v1399, %v1649
        %v1674 = vadd.f32 %v1400, %v1654
        %v1675 = vadd.f32 %v1401, %v1657
        %s1676 = sadd.s32 %s225, 18
        %s1677 = smul.u32 %s1676, 6
        %s1678 = smul.addr %s1677, 4
        %s1679 = scalar_lea.vmem %s215, %s1678
        %v1680 = vld [vmem:[%s1679 + $0x4] sm:$0x8]
        %v1681 = vld [vmem:[%s1679 + $0x8] sm:$0xf]
        %v1682 = vld [vmem:[%s1679 + $0xc] sm:$0x7]
        %v1683 = vld [vmem:[%s1679 + $0x1c] sm:$0x8]
        %v1684 = vld [vmem:[%s1679 + $0x20] sm:$0xf]
        %v1685 = vld [vmem:[%s1679 + $0x24] sm:$0x7]
        %v1686 = vld [vmem:[%s1679 + $0x34] sm:$0x8]
        %v1687 = vld [vmem:[%s1679 + $0x38] sm:$0xf]
        %v1688 = vld [vmem:[%s1679 + $0x3c] sm:$0x7]
        %v1689 = vld [vmem:[%s1679 + $0x4c] sm:$0x8]
        %v1690 = vld [vmem:[%s1679 + $0x50] sm:$0xf]
        %v1691 = vld [vmem:[%s1679 + $0x54] sm:$0x7]
        %v1692 = vld [vmem:[%s1679 + $0x64] sm:$0x8]
        %v1693 = vld [vmem:[%s1679 + $0x68] sm:$0xf]
        %v1694 = vld [vmem:[%s1679 + $0x6c] sm:$0x7]
        %v1695 = vld [vmem:[%s1679 + $0x7c] sm:$0x8]
        %v1696 = vld [vmem:[%s1679 + $0x80] sm:$0xf]
        %v1697 = vld [vmem:[%s1679 + $0x84] sm:$0x7]
        %v1698 = vld [vmem:[%s1679 + $0x94] sm:$0x8]
        %v1699 = vld [vmem:[%s1679 + $0x98] sm:$0xf]
        %v1700 = vld [vmem:[%s1679 + $0x9c] sm:$0x7]
        %v1701 = vld [vmem:[%s1679 + $0xac] sm:$0x8]
        %v1702 = vld [vmem:[%s1679 + $0xb0] sm:$0xf]
        %v1703 = vld [vmem:[%s1679 + $0xb4] sm:$0x7]
        %v1728 = vrot.slane %v1680, 7
        %v1729 = vrot.slane %v1728, 4
        %v1730 = vrot.slane %v1681, 7
        %v1731 = vsel %vm280, %v1729, %v1730
        %v1732 = vrot.slane %v1730, 4
        %v1733 = vrot.slane %v1682, 7
        %v1734 = vsel %vm280, %v1732, %v1733
        %v1735 = vrot.slane %v1683, 7
        %v1736 = vrot.slane %v1735, 4
        %v1737 = vrot.slane %v1684, 7
        %v1738 = vsel %vm280, %v1736, %v1737
        %v1739 = vrot.slane %v1737, 4
        %v1740 = vrot.slane %v1685, 7
        %v1741 = vsel %vm280, %v1739, %v1740
        %v1742 = vrot.slane %v1686, 7
        %v1743 = vrot.slane %v1742, 4
        %v1744 = vrot.slane %v1687, 7
        %v1745 = vsel %vm280, %v1743, %v1744
        %v1746 = vrot.slane %v1744, 4
        %v1747 = vrot.slane %v1688, 7
        %v1748 = vsel %vm280, %v1746, %v1747
        %v1749 = vrot.slane %v1689, 7
        %v1750 = vrot.slane %v1749, 4
        %v1751 = vrot.slane %v1690, 7
        %v1752 = vsel %vm280, %v1750, %v1751
        %v1753 = vrot.slane %v1751, 4
        %v1754 = vrot.slane %v1691, 7
        %v1755 = vsel %vm280, %v1753, %v1754
        %v1756 = vrot.slane %v1692, 7
        %v1757 = vrot.slane %v1756, 4
        %v1758 = vrot.slane %v1693, 7
        %v1759 = vsel %vm280, %v1757, %v1758
        %v1760 = vrot.slane %v1758, 4
        %v1761 = vrot.slane %v1694, 7
        %v1762 = vsel %vm280, %v1760, %v1761
        %v1763 = vrot.slane %v1695, 7
        %v1764 = vrot.slane %v1763, 4
        %v1765 = vrot.slane %v1696, 7
        %v1766 = vsel %vm280, %v1764, %v1765
        %v1767 = vrot.slane %v1765, 4
        %v1768 = vrot.slane %v1697, 7
        %v1769 = vsel %vm280, %v1767, %v1768
        %v1770 = vrot.slane %v1698, 7
        %v1771 = vrot.slane %v1770, 4
        %v1772 = vrot.slane %v1699, 7
        %v1773 = vsel %vm280, %v1771, %v1772
        %v1774 = vrot.slane %v1772, 4
        %v1775 = vrot.slane %v1700, 7
        %v1776 = vsel %vm280, %v1774, %v1775
        %v1777 = vrot.slane %v1701, 7
        %v1778 = vrot.slane %v1777, 4
        %v1779 = vrot.slane %v1702, 7
        %v1780 = vsel %vm280, %v1778, %v1779
        %v1781 = vrot.slane %v1779, 4
        %v1782 = vrot.slane %v1703, 7
        %v1783 = vsel %vm280, %v1781, %v1782
        %s1784 = scalar_lea.vmem %s219, 48
        %v1785 = vld [vmem:[%s1784] sm:$0xf]
        %v1786 = vld [vmem:[%s1784 + $0x4] sm:$0xf]
        %v1787 = vunpack.c.l.b16 %v1731
        %v1788 = vunpack.c.l.b16 %v1734
        %v1789 = vunpack.c.l.b16 %v1738
        %v1790 = vunpack.c.l.b16 %v1741
        %v1791 = vunpack.c.l.b16 %v1745
        %v1792 = vunpack.c.l.b16 %v1748
        %v1793 = vunpack.c.l.b16 %v1752
        %v1794 = vunpack.c.l.b16 %v1755
        %v1795 = vunpack.c.l.b16 %v1759
        %v1796 = vunpack.c.l.b16 %v1762
        %v1797 = vunpack.c.l.b16 %v1766
        %v1798 = vunpack.c.l.b16 %v1769
        %v1799 = vunpack.c.l.b16 %v1773
        %v1800 = vunpack.c.l.b16 %v1776
        %v1801 = vunpack.c.l.b16 %v1780
        %v1802 = vunpack.c.l.b16 %v1783
        %v1803 = vpack.c.b16 %v1788, %v1787
        %v1804 = vpack.c.b16 %v1790, %v1789
        %v1805 = vpack.c.b16 %v1792, %v1791
        %v1806 = vpack.c.b16 %v1794, %v1793
        %v1807 = vpack.c.b16 %v1796, %v1795
        %v1808 = vpack.c.b16 %v1798, %v1797
        %v1809 = vpack.c.b16 %v1800, %v1799
        %v1810 = vpack.c.b16 %v1802, %v1801
        %v1813 = vunpack.c.l.b16 %v1785
        %v1814 = vunpack.c.l.b16 %v1786
        %v1815 = vpack.c.b16 %v1814, %v1813
        %v1818 = vsel %vm388, %v1803, 0
        %v1821 = vsel %vm388, %v1804, 0
        %v1824 = vsel %vm388, %v1805, 0
        %v1827 = vsel %vm388, %v1806, 0
        %v1830 = vsel %vm388, %v1807, 0
        %v1833 = vsel %vm388, %v1808, 0
        %v1836 = vsel %vm388, %v1809, 0
        %v1839 = vsel %vm388, %v1810, 0
        %1841 = vmatprep.subr.bf16.mxu0 0
        %1842 = vmatpush1.bf16.msra.mxu0 %v1815
        %1843 = vmatprep.subr.bf16.mxu0 0
        %1844 = vmatpush1.bf16.msra.mxu0 0
        %1845 = vmatprep.subr.bf16.mxu0 0
        %1846 = vmatpush1.bf16.msra.mxu0 0
        %1847 = vmatprep.subr.bf16.mxu0 0
        %1848 = vmatpush1.bf16.msra.mxu0 0
        %1849 = vmatprep.subr.bf16.mxu0 0
        %1850 = vmatpush1.bf16.msra.mxu0 0
        %1851 = vmatprep.subr.bf16.mxu0 0
        %1852 = vmatpush1.bf16.msra.mxu0 0
        %1853 = vmatprep.subr.bf16.mxu0 0
        %1854 = vmatpush1.bf16.msra.mxu0 0
        %1855 = vmatprep.subr.bf16.mxu0 0
        %1856 = vmatpush1.bf16.msra.mxu0 0
        %1857 = vmatprep.subr.bf16.mxu0 0
        %1858 = vmatpush1.bf16.msra.mxu0 0
        %1859 = vmatprep.subr.bf16.mxu0 0
        %1860 = vmatpush1.bf16.msra.mxu0 0
        %1861 = vmatprep.subr.bf16.mxu0 0
        %1862 = vmatpush1.bf16.msra.mxu0 0
        %1863 = vmatprep.subr.bf16.mxu0 0
        %1864 = vmatpush1.bf16.msra.mxu0 0
        %1865 = vmatprep.subr.bf16.mxu0 0
        %1866 = vmatpush1.bf16.msra.mxu0 0
        %1867 = vmatprep.subr.bf16.mxu0 0
        %1868 = vmatpush1.bf16.msra.mxu0 0
        %1869 = vmatprep.subr.bf16.mxu0 0
        %1870 = vmatpush1.bf16.msra.mxu0 0
        %1871 = vmatprep.subr.bf16.mxu0 0
        %1872 = vmatpush1.bf16.msra.mxu0 0
        %1873 = vmatprep.mubr.bf16.mxu0 0
        %1874 = vmatmul.mubr.bf16.gmra.mrb[0].mxu0 %v1818
        %v1875 = vpop.f32.mrb[0].mxu0
        %v1876 = vadd.f32 0.0, %v1875
        %v1877 = vpop.f32.mrb[0].mxu0
        %v1878 = vpop.f32.mrb[0].mxu0
        %v1879 = vadd.f32 0.0, %v1878
        %v1880 = vpop.f32.mrb[0].mxu0
        %1881 = vmatprep.mubr.bf16.mxu0 0
        %1882 = vmatmul.mubr.bf16.gmra.mrb[0].mxu0 %v1821
        %v1883 = vpop.f32.mrb[0].mxu0
        %v1884 = vadd.f32 0.0, %v1883
        %v1885 = vpop.f32.mrb[0].mxu0
        %v1886 = vpop.f32.mrb[0].mxu0
        %v1887 = vadd.f32 0.0, %v1886
        %v1888 = vpop.f32.mrb[0].mxu0
        %1889 = vmatprep.mubr.bf16.mxu0 0
        %1890 = vmatmul.mubr.bf16.gmra.mrb[0].mxu0 %v1824
        %v1891 = vpop.f32.mrb[0].mxu0
        %v1892 = vadd.f32 0.0, %v1891
        %v1893 = vpop.f32.mrb[0].mxu0
        %v1894 = vpop.f32.mrb[0].mxu0
        %v1895 = vadd.f32 0.0, %v1894
        %v1896 = vpop.f32.mrb[0].mxu0
        %1897 = vmatprep.mubr.bf16.mxu0 0
        %1898 = vmatmul.mubr.bf16.gmra.mrb[0].mxu0 %v1827
        %v1899 = vpop.f32.mrb[0].mxu0
        %v1900 = vadd.f32 0.0, %v1899
        %v1901 = vpop.f32.mrb[0].mxu0
        %v1902 = vpop.f32.mrb[0].mxu0
        %v1903 = vadd.f32 0.0, %v1902
        %v1904 = vpop.f32.mrb[0].mxu0
        %1905 = vmatprep.mubr.bf16.mxu0 0
        %1906 = vmatmul.mubr.bf16.gmra.mrb[0].mxu0 %v1830
        %v1907 = vpop.f32.mrb[0].mxu0
        %v1908 = vadd.f32 0.0, %v1907
        %v1909 = vpop.f32.mrb[0].mxu0
        %v1910 = vpop.f32.mrb[0].mxu0
        %v1911 = vadd.f32 0.0, %v1910
        %v1912 = vpop.f32.mrb[0].mxu0
        %1913 = vmatprep.mubr.bf16.mxu0 0
        %1914 = vmatmul.mubr.bf16.gmra.mrb[0].mxu0 %v1833
        %v1915 = vpop.f32.mrb[0].mxu0
        %v1916 = vadd.f32 0.0, %v1915
        %v1917 = vpop.f32.mrb[0].mxu0
        %v1918 = vpop.f32.mrb[0].mxu0
        %v1919 = vadd.f32 0.0, %v1918
        %v1920 = vpop.f32.mrb[0].mxu0
        %1921 = vmatprep.mubr.bf16.mxu0 0
        %1922 = vmatmul.mubr.bf16.gmra.mrb[0].mxu0 %v1836
        %v1923 = vpop.f32.mrb[0].mxu0
        %v1924 = vadd.f32 0.0, %v1923
        %v1925 = vpop.f32.mrb[0].mxu0
        %v1926 = vpop.f32.mrb[0].mxu0
        %v1927 = vadd.f32 0.0, %v1926
        %v1928 = vpop.f32.mrb[0].mxu0
        %1929 = vmatprep.mubr.bf16.mxu0 0
        %1930 = vmatmul.mubr.bf16.gmra.mrb[0].mxu0 %v1839
        %v1931 = vpop.f32.mrb[0].mxu0
        %v1932 = vadd.f32 0.0, %v1931
        %v1933 = vpop.f32.mrb[0].mxu0
        %v1934 = vpop.f32.mrb[0].mxu0
        %v1935 = vadd.f32 0.0, %v1934
        %v1936 = vpop.f32.mrb[0].mxu0
        %1937 = vdwg.mxu0
        %v1938 = vadd.f32 %v1660, %v1876
        %v1939 = vadd.f32 %v1661, %v1879
        %v1940 = vadd.f32 %v1662, %v1884
        %v1941 = vadd.f32 %v1663, %v1887
        %v1942 = vadd.f32 %v1664, %v1892
        %v1943 = vadd.f32 %v1665, %v1895
        %v1944 = vadd.f32 %v1666, %v1900
        %v1945 = vadd.f32 %v1667, %v1903
        %v1946 = vadd.f32 %v1668, %v1908
        %v1947 = vadd.f32 %v1669, %v1911
        %v1948 = vadd.f32 %v1670, %v1916
        %v1949 = vadd.f32 %v1671, %v1919
        %v1950 = vadd.f32 %v1672, %v1924
        %v1951 = vadd.f32 %v1673, %v1927
        %v1952 = vadd.f32 %v1674, %v1932
        %v1953 = vadd.f32 %v1675, %v1935
        %v1954 = vld [vmem:[%s1679 + $0xc] sm:$0xf]
        %v1955 = vld [vmem:[%s1679 + $0x24] sm:$0xf]
        %v1956 = vld [vmem:[%s1679 + $0x3c] sm:$0xf]
        %v1957 = vld [vmem:[%s1679 + $0x54] sm:$0xf]
        %v1958 = vld [vmem:[%s1679 + $0x6c] sm:$0xf]
        %v1959 = vld [vmem:[%s1679 + $0x84] sm:$0xf]
        %v1960 = vld [vmem:[%s1679 + $0x9c] sm:$0xf]
        %v1961 = vld [vmem:[%s1679 + $0xb4] sm:$0xf]
        %s1962 = scalar_lea.vmem %s219, 56
        %v1963 = vld [vmem:[%s1962] sm:$0xf]
        %v1964 = vld [vmem:[%s1962 + $0x4] sm:$0xf]
        %v1973 = vunpack.c.l.b16 %v1681
        %v1974 = vunpack.c.l.b16 %v1954
        %v1975 = vunpack.c.l.b16 %v1684
        %v1976 = vunpack.c.l.b16 %v1955
        %v1977 = vunpack.c.l.b16 %v1687
        %v1978 = vunpack.c.l.b16 %v1956
        %v1979 = vunpack.c.l.b16 %v1690
        %v1980 = vunpack.c.l.b16 %v1957
        %v1981 = vunpack.c.l.b16 %v1693
        %v1982 = vunpack.c.l.b16 %v1958
        %v1983 = vunpack.c.l.b16 %v1696
        %v1984 = vunpack.c.l.b16 %v1959
        %v1985 = vunpack.c.l.b16 %v1699
        %v1986 = vunpack.c.l.b16 %v1960
        %v1987 = vunpack.c.l.b16 %v1702
        %v1988 = vunpack.c.l.b16 %v1961
        %v1989 = vpack.c.b16 %v1974, %v1973
        %v1990 = vpack.c.b16 %v1976, %v1975
        %v1991 = vpack.c.b16 %v1978, %v1977
        %v1992 = vpack.c.b16 %v1980, %v1979
        %v1993 = vpack.c.b16 %v1982, %v1981
        %v1994 = vpack.c.b16 %v1984, %v1983
        %v1995 = vpack.c.b16 %v1986, %v1985
        %v1996 = vpack.c.b16 %v1988, %v1987
        %v1999 = vunpack.c.l.b16 %v1963
        %v2000 = vunpack.c.l.b16 %v1964
        %v2001 = vpack.c.b16 %v2000, %v1999
        %v2004 = vsel %vm388, %v1989, 0
        %v2007 = vsel %vm388, %v1990, 0
        %v2010 = vsel %vm388, %v1991, 0
        %v2013 = vsel %vm388, %v1992, 0
        %v2016 = vsel %vm388, %v1993, 0
        %v2019 = vsel %vm388, %v1994, 0
        %v2022 = vsel %vm388, %v1995, 0
        %v2025 = vsel %vm388, %v1996, 0
        %2027 = vmatprep.subr.bf16.mxu0 0
        %2028 = vmatpush1.bf16.msra.mxu0 %v2001
        %2029 = vmatprep.subr.bf16.mxu0 0
        %2030 = vmatpush1.bf16.msra.mxu0 0
        %2031 = vmatprep.subr.bf16.mxu0 0
        %2032 = vmatpush1.bf16.msra.mxu0 0
        %2033 = vmatprep.subr.bf16.mxu0 0
        %2034 = vmatpush1.bf16.msra.mxu0 0
        %2035 = vmatprep.subr.bf16.mxu0 0
        %2036 = vmatpush1.bf16.msra.mxu0 0
        %2037 = vmatprep.subr.bf16.mxu0 0
        %2038 = vmatpush1.bf16.msra.mxu0 0
        %2039 = vmatprep.subr.bf16.mxu0 0
        %2040 = vmatpush1.bf16.msra.mxu0 0
        %2041 = vmatprep.subr.bf16.mxu0 0
        %2042 = vmatpush1.bf16.msra.mxu0 0
        %2043 = vmatprep.subr.bf16.mxu0 0
        %2044 = vmatpush1.bf16.msra.mxu0 0
        %2045 = vmatprep.subr.bf16.mxu0 0
        %2046 = vmatpush1.bf16.msra.mxu0 0
        %2047 = vmatprep.subr.bf16.mxu0 0
        %2048 = vmatpush1.bf16.msra.mxu0 0
        %2049 = vmatprep.subr.bf16.mxu0 0
        %2050 = vmatpush1.bf16.msra.mxu0 0
        %2051 = vmatprep.subr.bf16.mxu0 0
        %2052 = vmatpush1.bf16.msra.mxu0 0
        %2053 = vmatprep.subr.bf16.mxu0 0
        %2054 = vmatpush1.bf16.msra.mxu0 0
        %2055 = vmatprep.subr.bf16.mxu0 0
        %2056 = vmatpush1.bf16.msra.mxu0 0
        %2057 = vmatprep.subr.bf16.mxu0 0
        %2058 = vmatpush1.bf16.msra.mxu0 0
        %2059 = vmatprep.mubr.bf16.mxu0 0
        %2060 = vmatmul.mubr.bf16.gmra.mrb[0].mxu0 %v2004
        %v2061 = vpop.f32.mrb[0].mxu0
        %v2062 = vadd.f32 0.0, %v2061
        %v2063 = vpop.f32.mrb[0].mxu0
        %v2064 = vpop.f32.mrb[0].mxu0
        %v2065 = vadd.f32 0.0, %v2064
        %v2066 = vpop.f32.mrb[0].mxu0
        %2067 = vmatprep.mubr.bf16.mxu0 0
        %2068 = vmatmul.mubr.bf16.gmra.mrb[0].mxu0 %v2007
        %v2069 = vpop.f32.mrb[0].mxu0
        %v2070 = vadd.f32 0.0, %v2069
        %v2071 = vpop.f32.mrb[0].mxu0
        %v2072 = vpop.f32.mrb[0].mxu0
        %v2073 = vadd.f32 0.0, %v2072
        %v2074 = vpop.f32.mrb[0].mxu0
        %2075 = vmatprep.mubr.bf16.mxu0 0
        %2076 = vmatmul.mubr.bf16.gmra.mrb[0].mxu0 %v2010
        %v2077 = vpop.f32.mrb[0].mxu0
        %v2078 = vadd.f32 0.0, %v2077
        %v2079 = vpop.f32.mrb[0].mxu0
        %v2080 = vpop.f32.mrb[0].mxu0
        %v2081 = vadd.f32 0.0, %v2080
        %v2082 = vpop.f32.mrb[0].mxu0
        %2083 = vmatprep.mubr.bf16.mxu0 0
        %2084 = vmatmul.mubr.bf16.gmra.mrb[0].mxu0 %v2013
        %v2085 = vpop.f32.mrb[0].mxu0
        %v2086 = vadd.f32 0.0, %v2085
        %v2087 = vpop.f32.mrb[0].mxu0
        %v2088 = vpop.f32.mrb[0].mxu0
        %v2089 = vadd.f32 0.0, %v2088
        %v2090 = vpop.f32.mrb[0].mxu0
        %2091 = vmatprep.mubr.bf16.mxu0 0
        %2092 = vmatmul.mubr.bf16.gmra.mrb[0].mxu0 %v2016
        %v2093 = vpop.f32.mrb[0].mxu0
        %v2094 = vadd.f32 0.0, %v2093
        %v2095 = vpop.f32.mrb[0].mxu0
        %v2096 = vpop.f32.mrb[0].mxu0
        %v2097 = vadd.f32 0.0, %v2096
        %v2098 = vpop.f32.mrb[0].mxu0
        %2099 = vmatprep.mubr.bf16.mxu0 0
        %2100 = vmatmul.mubr.bf16.gmra.mrb[0].mxu0 %v2019
        %v2101 = vpop.f32.mrb[0].mxu0
        %v2102 = vadd.f32 0.0, %v2101
        %v2103 = vpop.f32.mrb[0].mxu0
        %v2104 = vpop.f32.mrb[0].mxu0
        %v2105 = vadd.f32 0.0, %v2104
        %v2106 = vpop.f32.mrb[0].mxu0
        %2107 = vmatprep.mubr.bf16.mxu0 0
        %2108 = vmatmul.mubr.bf16.gmra.mrb[0].mxu0 %v2022
        %v2109 = vpop.f32.mrb[0].mxu0
        %v2110 = vadd.f32 0.0, %v2109
        %v2111 = vpop.f32.mrb[0].mxu0
        %v2112 = vpop.f32.mrb[0].mxu0
        %v2113 = vadd.f32 0.0, %v2112
        %v2114 = vpop.f32.mrb[0].mxu0
        %2115 = vmatprep.mubr.bf16.mxu0 0
        %2116 = vmatmul.mubr.bf16.gmra.mrb[0].mxu0 %v2025
        %v2117 = vpop.f32.mrb[0].mxu0
        %v2118 = vadd.f32 0.0, %v2117
        %v2119 = vpop.f32.mrb[0].mxu0
        %v2120 = vpop.f32.mrb[0].mxu0
        %v2121 = vadd.f32 0.0, %v2120
        %v2122 = vpop.f32.mrb[0].mxu0
        %2123 = vdwg.mxu0
        %v2124 = vadd.f32 %v1938, %v2062
        %v2125 = vadd.f32 %v1939, %v2065
        %v2126 = vadd.f32 %v1940, %v2070
        %v2127 = vadd.f32 %v1941, %v2073
        %v2128 = vadd.f32 %v1942, %v2078
        %v2129 = vadd.f32 %v1943, %v2081
        %v2130 = vadd.f32 %v1944, %v2086
        %v2131 = vadd.f32 %v1945, %v2089
        %v2132 = vadd.f32 %v1946, %v2094
        %v2133 = vadd.f32 %v1947, %v2097
        %v2134 = vadd.f32 %v1948, %v2102
        %v2135 = vadd.f32 %v1949, %v2105
        %v2136 = vadd.f32 %v1950, %v2110
        %v2137 = vadd.f32 %v1951, %v2113
        %v2138 = vadd.f32 %v1952, %v2118
        %v2139 = vadd.f32 %v1953, %v2121
        %v2140 = vld [vmem:[%s1679 + $0x8] sm:$0xe]
        %v2141 = vld [vmem:[%s1679 + $0xc] sm:$0xf]
        %v2142 = vld [vmem:[%s1679 + $0x10] sm:$0x1]
        %v2143 = vld [vmem:[%s1679 + $0x20] sm:$0xe]
        %v2144 = vld [vmem:[%s1679 + $0x24] sm:$0xf]
        %v2145 = vld [vmem:[%s1679 + $0x28] sm:$0x1]
        %v2146 = vld [vmem:[%s1679 + $0x38] sm:$0xe]
        %v2147 = vld [vmem:[%s1679 + $0x3c] sm:$0xf]
        %v2148 = vld [vmem:[%s1679 + $0x40] sm:$0x1]
        %v2149 = vld [vmem:[%s1679 + $0x50] sm:$0xe]
        %v2150 = vld [vmem:[%s1679 + $0x54] sm:$0xf]
        %v2151 = vld [vmem:[%s1679 + $0x58] sm:$0x1]
        %v2152 = vld [vmem:[%s1679 + $0x68] sm:$0xe]
        %v2153 = vld [vmem:[%s1679 + $0x6c] sm:$0xf]
        %v2154 = vld [vmem:[%s1679 + $0x70] sm:$0x1]
        %v2155 = vld [vmem:[%s1679 + $0x80] sm:$0xe]
        %v2156 = vld [vmem:[%s1679 + $0x84] sm:$0xf]
        %v2157 = vld [vmem:[%s1679 + $0x88] sm:$0x1]
        %v2158 = vld [vmem:[%s1679 + $0x98] sm:$0xe]
        %v2159 = vld [vmem:[%s1679 + $0x9c] sm:$0xf]
        %v2160 = vld [vmem:[%s1679 + $0xa0] sm:$0x1]
        %v2161 = vld [vmem:[%s1679 + $0xb0] sm:$0xe]
        %v2162 = vld [vmem:[%s1679 + $0xb4] sm:$0xf]
        %v2163 = vld [vmem:[%s1679 + $0xb8] sm:$0x1]
        %v2188 = vrot.slane %v2140, 5
        %v2189 = vrot.slane %v2188, 4
        %v2190 = vrot.slane %v2141, 5
        %v2191 = vsel %vm711, %v2189, %v2190
        %v2192 = vrot.slane %v2190, 4
        %v2193 = vrot.slane %v2142, 5
        %v2194 = vsel %vm711, %v2192, %v2193
        %v2195 = vrot.slane %v2143, 5
        %v2196 = vrot.slane %v2195, 4
        %v2197 = vrot.slane %v2144, 5
        %v2198 = vsel %vm711, %v2196, %v2197
        %v2199 = vrot.slane %v2197, 4
        %v2200 = vrot.slane %v2145, 5
        %v2201 = vsel %vm711, %v2199, %v2200
        %v2202 = vrot.slane %v2146, 5
        %v2203 = vrot.slane %v2202, 4
        %v2204 = vrot.slane %v2147, 5
        %v2205 = vsel %vm711, %v2203, %v2204
        %v2206 = vrot.slane %v2204, 4
        %v2207 = vrot.slane %v2148, 5
        %v2208 = vsel %vm711, %v2206, %v2207
        %v2209 = vrot.slane %v2149, 5
        %v2210 = vrot.slane %v2209, 4
        %v2211 = vrot.slane %v2150, 5
        %v2212 = vsel %vm711, %v2210, %v2211
        %v2213 = vrot.slane %v2211, 4
        %v2214 = vrot.slane %v2151, 5
        %v2215 = vsel %vm711, %v2213, %v2214
        %v2216 = vrot.slane %v2152, 5
        %v2217 = vrot.slane %v2216, 4
        %v2218 = vrot.slane %v2153, 5
        %v2219 = vsel %vm711, %v2217, %v2218
        %v2220 = vrot.slane %v2218, 4
        %v2221 = vrot.slane %v2154, 5
        %v2222 = vsel %vm711, %v2220, %v2221
        %v2223 = vrot.slane %v2155, 5
        %v2224 = vrot.slane %v2223, 4
        %v2225 = vrot.slane %v2156, 5
        %v2226 = vsel %vm711, %v2224, %v2225
        %v2227 = vrot.slane %v2225, 4
        %v2228 = vrot.slane %v2157, 5
        %v2229 = vsel %vm711, %v2227, %v2228
        %v2230 = vrot.slane %v2158, 5
        %v2231 = vrot.slane %v2230, 4
        %v2232 = vrot.slane %v2159, 5
        %v2233 = vsel %vm711, %v2231, %v2232
        %v2234 = vrot.slane %v2232, 4
        %v2235 = vrot.slane %v2160, 5
        %v2236 = vsel %vm711, %v2234, %v2235
        %v2237 = vrot.slane %v2161, 5
        %v2238 = vrot.slane %v2237, 4
        %v2239 = vrot.slane %v2162, 5
        %v2240 = vsel %vm711, %v2238, %v2239
        %v2241 = vrot.slane %v2239, 4
        %v2242 = vrot.slane %v2163, 5
        %v2243 = vsel %vm711, %v2241, %v2242
        %s2244 = scalar_lea.vmem %s219, 64
        %v2245 = vld [vmem:[%s2244] sm:$0xf]
        %v2246 = vld [vmem:[%s2244 + $0x4] sm:$0xf]
        %v2247 = vunpack.c.l.b16 %v2191
        %v2248 = vunpack.c.l.b16 %v2194
        %v2249 = vunpack.c.l.b16 %v2198
        %v2250 = vunpack.c.l.b16 %v2201
        %v2251 = vunpack.c.l.b16 %v2205
        %v2252 = vunpack.c.l.b16 %v2208
        %v2253 = vunpack.c.l.b16 %v2212
        %v2254 = vunpack.c.l.b16 %v2215
        %v2255 = vunpack.c.l.b16 %v2219
        %v2256 = vunpack.c.l.b16 %v2222
        %v2257 = vunpack.c.l.b16 %v2226
        %v2258 = vunpack.c.l.b16 %v2229
        %v2259 = vunpack.c.l.b16 %v2233
        %v2260 = vunpack.c.l.b16 %v2236
        %v2261 = vunpack.c.l.b16 %v2240
        %v2262 = vunpack.c.l.b16 %v2243
        %v2263 = vpack.c.b16 %v2248, %v2247
        %v2264 = vpack.c.b16 %v2250, %v2249
        %v2265 = vpack.c.b16 %v2252, %v2251
        %v2266 = vpack.c.b16 %v2254, %v2253
        %v2267 = vpack.c.b16 %v2256, %v2255
        %v2268 = vpack.c.b16 %v2258, %v2257
        %v2269 = vpack.c.b16 %v2260, %v2259
        %v2270 = vpack.c.b16 %v2262, %v2261
        %v2273 = vunpack.c.l.b16 %v2245
        %v2274 = vunpack.c.l.b16 %v2246
        %v2275 = vpack.c.b16 %v2274, %v2273
        %v2278 = vsel %vm388, %v2263, 0
        %v2281 = vsel %vm388, %v2264, 0
        %v2284 = vsel %vm388, %v2265, 0
        %v2287 = vsel %vm388, %v2266, 0
        %v2290 = vsel %vm388, %v2267, 0
        %v2293 = vsel %vm388, %v2268, 0
        %v2296 = vsel %vm388, %v2269, 0
        %v2299 = vsel %vm388, %v2270, 0
        %2301 = vmatprep.subr.bf16.mxu0 0
        %2302 = vmatpush1.bf16.msra.mxu0 %v2275
        %2303 = vmatprep.subr.bf16.mxu0 0
        %2304 = vmatpush1.bf16.msra.mxu0 0
        %2305 = vmatprep.subr.bf16.mxu0 0
        %2306 = vmatpush1.bf16.msra.mxu0 0
        %2307 = vmatprep.subr.bf16.mxu0 0
        %2308 = vmatpush1.bf16.msra.mxu0 0
        %2309 = vmatprep.subr.bf16.mxu0 0
        %2310 = vmatpush1.bf16.msra.mxu0 0
        %2311 = vmatprep.subr.bf16.mxu0 0
        %2312 = vmatpush1.bf16.msra.mxu0 0
        %2313 = vmatprep.subr.bf16.mxu0 0
        %2314 = vmatpush1.bf16.msra.mxu0 0
        %2315 = vmatprep.subr.bf16.mxu0 0
        %2316 = vmatpush1.bf16.msra.mxu0 0
        %2317 = vmatprep.subr.bf16.mxu0 0
        %2318 = vmatpush1.bf16.msra.mxu0 0
        %2319 = vmatprep.subr.bf16.mxu0 0
        %2320 = vmatpush1.bf16.msra.mxu0 0
        %2321 = vmatprep.subr.bf16.mxu0 0
        %2322 = vmatpush1.bf16.msra.mxu0 0
        %2323 = vmatprep.subr.bf16.mxu0 0
        %2324 = vmatpush1.bf16.msra.mxu0 0
        %2325 = vmatprep.subr.bf16.mxu0 0
        %2326 = vmatpush1.bf16.msra.mxu0 0
        %2327 = vmatprep.subr.bf16.mxu0 0
        %2328 = vmatpush1.bf16.msra.mxu0 0
        %2329 = vmatprep.subr.bf16.mxu0 0
        %2330 = vmatpush1.bf16.msra.mxu0 0
        %2331 = vmatprep.subr.bf16.mxu0 0
        %2332 = vmatpush1.bf16.msra.mxu0 0
        %2333 = vmatprep.mubr.bf16.mxu0 0
        %2334 = vmatmul.mubr.bf16.gmra.mrb[0].mxu0 %v2278
        %v2335 = vpop.f32.mrb[0].mxu0
        %v2336 = vadd.f32 0.0, %v2335
        %v2337 = vpop.f32.mrb[0].mxu0
        %v2338 = vpop.f32.mrb[0].mxu0
        %v2339 = vadd.f32 0.0, %v2338
        %v2340 = vpop.f32.mrb[0].mxu0
        %2341 = vmatprep.mubr.bf16.mxu0 0
        %2342 = vmatmul.mubr.bf16.gmra.mrb[0].mxu0 %v2281
        %v2343 = vpop.f32.mrb[0].mxu0
        %v2344 = vadd.f32 0.0, %v2343
        %v2345 = vpop.f32.mrb[0].mxu0
        %v2346 = vpop.f32.mrb[0].mxu0
        %v2347 = vadd.f32 0.0, %v2346
        %v2348 = vpop.f32.mrb[0].mxu0
        %2349 = vmatprep.mubr.bf16.mxu0 0
        %2350 = vmatmul.mubr.bf16.gmra.mrb[0].mxu0 %v2284
        %v2351 = vpop.f32.mrb[0].mxu0
        %v2352 = vadd.f32 0.0, %v2351
        %v2353 = vpop.f32.mrb[0].mxu0
        %v2354 = vpop.f32.mrb[0].mxu0
        %v2355 = vadd.f32 0.0, %v2354
        %v2356 = vpop.f32.mrb[0].mxu0
        %2357 = vmatprep.mubr.bf16.mxu0 0
        %2358 = vmatmul.mubr.bf16.gmra.mrb[0].mxu0 %v2287
        %v2359 = vpop.f32.mrb[0].mxu0
        %v2360 = vadd.f32 0.0, %v2359
        %v2361 = vpop.f32.mrb[0].mxu0
        %v2362 = vpop.f32.mrb[0].mxu0
        %v2363 = vadd.f32 0.0, %v2362
        %v2364 = vpop.f32.mrb[0].mxu0
        %2365 = vmatprep.mubr.bf16.mxu0 0
        %2366 = vmatmul.mubr.bf16.gmra.mrb[0].mxu0 %v2290
        %v2367 = vpop.f32.mrb[0].mxu0
        %v2368 = vadd.f32 0.0, %v2367
        %v2369 = vpop.f32.mrb[0].mxu0
        %v2370 = vpop.f32.mrb[0].mxu0
        %v2371 = vadd.f32 0.0, %v2370
        %v2372 = vpop.f32.mrb[0].mxu0
        %2373 = vmatprep.mubr.bf16.mxu0 0
        %2374 = vmatmul.mubr.bf16.gmra.mrb[0].mxu0 %v2293
        %v2375 = vpop.f32.mrb[0].mxu0
        %v2376 = vadd.f32 0.0, %v2375
        %v2377 = vpop.f32.mrb[0].mxu0
        %v2378 = vpop.f32.mrb[0].mxu0
        %v2379 = vadd.f32 0.0, %v2378
        %v2380 = vpop.f32.mrb[0].mxu0
        %2381 = vmatprep.mubr.bf16.mxu0 0
        %2382 = vmatmul.mubr.bf16.gmra.mrb[0].mxu0 %v2296
        %v2383 = vpop.f32.mrb[0].mxu0
        %v2384 = vadd.f32 0.0, %v2383
        %v2385 = vpop.f32.mrb[0].mxu0
        %v2386 = vpop.f32.mrb[0].mxu0
        %v2387 = vadd.f32 0.0, %v2386
        %v2388 = vpop.f32.mrb[0].mxu0
        %2389 = vmatprep.mubr.bf16.mxu0 0
        %2390 = vmatmul.mubr.bf16.gmra.mrb[0].mxu0 %v2299
        %v2391 = vpop.f32.mrb[0].mxu0
        %v2392 = vadd.f32 0.0, %v2391
        %v2393 = vpop.f32.mrb[0].mxu0
        %v2394 = vpop.f32.mrb[0].mxu0
        %v2395 = vadd.f32 0.0, %v2394
        %v2396 = vpop.f32.mrb[0].mxu0
        %2397 = vdwg.mxu0
        %v2398 = vadd.f32 %v2124, %v2336
        %v2399 = vadd.f32 %v2125, %v2339
        %v2400 = vadd.f32 %v2126, %v2344
        %v2401 = vadd.f32 %v2127, %v2347
        %v2402 = vadd.f32 %v2128, %v2352
        %v2403 = vadd.f32 %v2129, %v2355
        %v2404 = vadd.f32 %v2130, %v2360
        %v2405 = vadd.f32 %v2131, %v2363
        %v2406 = vadd.f32 %v2132, %v2368
        %v2407 = vadd.f32 %v2133, %v2371
        %v2408 = vadd.f32 %v2134, %v2376
        %v2409 = vadd.f32 %v2135, %v2379
        %v2410 = vadd.f32 %v2136, %v2384
        %v2411 = vadd.f32 %v2137, %v2387
        %v2412 = vadd.f32 %v2138, %v2392
        %v2413 = vadd.f32 %v2139, %v2395
        %v2414 = vld [vmem:[%s222] sm:$0x1]
        %v2416 = vlaneseq
        %v2417 = vshrl.u32 %v2416, 7
        %v2418 = vsub.s32 0, %v2417
        %v2419 = vrot.slane %v2414, %v2418
        %v2421 = vadd.f32 %v2398, %v2419
        %v2422 = vadd.f32 %v2399, %v2419
        %v2423 = vadd.f32 %v2400, %v2419
        %v2424 = vadd.f32 %v2401, %v2419
        %v2425 = vadd.f32 %v2402, %v2419
        %v2426 = vadd.f32 %v2403, %v2419
        %v2427 = vadd.f32 %v2404, %v2419
        %v2428 = vadd.f32 %v2405, %v2419
        %v2429 = vadd.f32 %v2406, %v2419
        %v2430 = vadd.f32 %v2407, %v2419
        %v2431 = vadd.f32 %v2408, %v2419
        %v2432 = vadd.f32 %v2409, %v2419
        %v2433 = vadd.f32 %v2410, %v2419
        %v2434 = vadd.f32 %v2411, %v2419
        %v2435 = vadd.f32 %v2412, %v2419
        %v2436 = vadd.f32 %v2413, %v2419
        %v2437 = vpack.c.bf16 %v2422, %v2421
        %v2438 = vpack.c.bf16 %v2424, %v2423
        %v2439 = vpack.c.bf16 %v2426, %v2425
        %v2440 = vpack.c.bf16 %v2428, %v2427
        %v2441 = vpack.c.bf16 %v2430, %v2429
        %v2442 = vpack.c.bf16 %v2432, %v2431
        %v2443 = vpack.c.bf16 %v2434, %v2433
        %v2444 = vpack.c.bf16 %v2436, %v2435
        %v2453 = vunpack.c.l.b16 %v2437
        %v2454 = vunpack.c.h.b16 %v2437
        %v2455 = vunpack.c.l.b16 %v2438
        %v2456 = vunpack.c.h.b16 %v2438
        %v2457 = vunpack.c.l.b16 %v2439
        %v2458 = vunpack.c.h.b16 %v2439
        %v2459 = vunpack.c.l.b16 %v2440
        %v2460 = vunpack.c.h.b16 %v2440
        %v2461 = vunpack.c.l.b16 %v2441
        %v2462 = vunpack.c.h.b16 %v2441
        %v2463 = vunpack.c.l.b16 %v2442
        %v2464 = vunpack.c.h.b16 %v2442
        %v2465 = vunpack.c.l.b16 %v2443
        %v2466 = vunpack.c.h.b16 %v2443
        %v2467 = vunpack.c.l.b16 %v2444
        %v2468 = vunpack.c.h.b16 %v2444
        %v2469 = vpack.c.b16 %v2453, %v2453
        %v2470 = vpack.c.b16 %v2454, %v2454
        %v2471 = vpack.c.b16 %v2455, %v2455
        %v2472 = vpack.c.b16 %v2456, %v2456
        %v2473 = vpack.c.b16 %v2457, %v2457
        %v2474 = vpack.c.b16 %v2458, %v2458
        %v2475 = vpack.c.b16 %v2459, %v2459
        %v2476 = vpack.c.b16 %v2460, %v2460
        %v2477 = vpack.c.b16 %v2461, %v2461
        %v2478 = vpack.c.b16 %v2462, %v2462
        %v2479 = vpack.c.b16 %v2463, %v2463
        %v2480 = vpack.c.b16 %v2464, %v2464
        %v2481 = vpack.c.b16 %v2465, %v2465
        %v2482 = vpack.c.b16 %v2466, %v2466
        %v2483 = vpack.c.b16 %v2467, %v2467
        %v2484 = vpack.c.b16 %v2468, %v2468
        %vm2501 = vcmask 257024
        %2502 = vst.msk [vmem:[%s210] sm:$0xf] %vm2501, %v2469
        %2503 = vst.msk [vmem:[%s210 + $0x4] sm:$0xf] %vm2501, %v2470
        %2504 = vst.msk [vmem:[%s210 + $0x8] sm:$0xf] %vm2501, %v2471
        %2505 = vst.msk [vmem:[%s210 + $0xc] sm:$0xf] %vm2501, %v2472
        %2506 = vst.msk [vmem:[%s210 + $0x10] sm:$0xf] %vm2501, %v2473
        %2507 = vst.msk [vmem:[%s210 + $0x14] sm:$0xf] %vm2501, %v2474
        %2508 = vst.msk [vmem:[%s210 + $0x18] sm:$0xf] %vm2501, %v2475
        %2509 = vst.msk [vmem:[%s210 + $0x1c] sm:$0xf] %vm2501, %v2476
        %2510 = vst.msk [vmem:[%s210 + $0x20] sm:$0xf] %vm2501, %v2477
        %2511 = vst.msk [vmem:[%s210 + $0x24] sm:$0xf] %vm2501, %v2478
        %2512 = vst.msk [vmem:[%s210 + $0x28] sm:$0xf] %vm2501, %v2479
        %2513 = vst.msk [vmem:[%s210 + $0x2c] sm:$0xf] %vm2501, %v2480
        %2514 = vst.msk [vmem:[%s210 + $0x30] sm:$0xf] %vm2501, %v2481
        %2515 = vst.msk [vmem:[%s210 + $0x34] sm:$0xf] %vm2501, %v2482
        %2516 = vst.msk [vmem:[%s210 + $0x38] sm:$0xf] %vm2501, %v2483
        %2517 = vst.msk [vmem:[%s210 + $0x3c] sm:$0xf] %vm2501, %v2484
        %s2518 = sand.u32 %s126, 1
        %s2519 = scalar_lea.sflag [#allocation3], %s2518
        %s2520 = sand.u32 %s126, 1
        %s2521 = smul.addr %s2520, 64
        %s2522 = scalar_lea.vmem [#allocation2], %s2521
        // Predicated region
        $region33: #{tpu_custom_call.1} parent=31 // pred_check
          %p2523 = pneg %p136
        $region34: #{tpu_custom_call.1} parent=31 // pred_check_branch
          %2525 = sbr.rel (%p2523) target = $region36
        $region35: #{tpu_custom_call.1} parent=31 // pred_region
          %s2526 = smul.u32 8, %s24
          %s2528 = ssub.s32 1024, 1024
          %2529 = vsyncadd %s2519, %s2528
          %s2530 = smul.addr %s2526, 2
          %s2531 = sadd.s32 %s23, %s2530
          %s2532 = smul.addr %s22, 32
          %s2533 = sadd.s32 %s2531, %s2532
          %s2534 = smul.addr %s2533, 64
          %s2535 = scalar_lea.hbm %s3, %s2534
          %s2536 = sshll.u32 %s2522, 4
          %s2537 = int_to_ptr.vmem [resolvable:$true] %s2536
          %2542 = dma.vmem_to_hbm [thread:$0]  %s2537, 1024, %s2535, %s2519, 64, 64, 4
        $region36: #{tpu_custom_call.1} parent=31 // pred_fallthru
          _
      $region32: #{tpu_custom_call.1} parent=5 // pred_fallthru
        _
      %p2543 = scmp.le.s32.totalorder 2, %s12
      // Predicated region
      $region37: #{tpu_custom_call.1} parent=5 // pred_check
        %p2544 = pneg %p2543
      $region38: #{tpu_custom_call.1} parent=5 // pred_check_branch
        %2546 = sbr.rel (%p2544) target = $region40
      $region39: #{tpu_custom_call.1} parent=5 // pred_region
        %s2547 = ssub.s32 %s12, 2
        // Predicated region
        $region41: #{tpu_custom_call.1} parent=39 // pred_check
          %p2548 = pneg %p142
        $region42: #{tpu_custom_call.1} parent=39 // pred_check_branch
          %2550 = sbr.rel (%p2548) target = $region44
        $region43: #{tpu_custom_call.1} parent=39 // pred_region
          %s2551 = sand.u32 %s127, 1
          %s2552 = scalar_lea.sflag [#allocation3], %s2551
          %s2553 = sand.u32 %s127, 1
          %s2554 = smul.addr %s2553, 64
          %s2555 = scalar_lea.vmem [#allocation2], %s2554
          %2556 = dma.done %s2552, 1024
        $region44: #{tpu_custom_call.1} parent=39 // pred_fallthru
          _
      $region40: #{tpu_custom_call.1} parent=5 // pred_fallthru
        _
    $region6: #{tpu_custom_call.1} parent=1 // loop_footer
      %s16 = sadd.s32 1, %s12
    $region7: #{tpu_custom_call.1} parent=1 // loop_footer_branch
      %11 = sbr.rel target = $region3
    $region8: #{tpu_custom_call.1} parent=1 // loop_exit
      _
    %2557 = vsyncpa [#allocation3], 1
    %s2558 = scalar_lea.sflag [#allocation3], 1
    %2559 = vsyncpa %s2558, 1

</llo_original>
